<compile_context>
chip_gen: v6e
topology: v6e:2x2x1
jax: 0.10.0
libtpu: 0.0.40
codegen_flags: <defaults>
</compile_context>

<pallas_src>
import numpy as np

import jax
import jax.numpy as jnp
from jax.experimental import pallas as pl
from jax.experimental.pallas import tpu as pltpu


# Fixed architecture sizes (fc1 = 20*4*4 requires 28x28 inputs).
K = 5                 # conv kernel size
H0 = 28               # input spatial size
H1 = H0 - K + 1       # 24 = conv1 output spatial
P1 = H1 // 2          # 12 = pool1 output spatial
H2 = P1 - K + 1       # 8  = conv2 output spatial
P2 = H2 // 2          # 4  = pool2 output spatial
C1 = 10               # conv1 out channels
C2 = 20               # conv2 out channels
F1 = 160              # fc1 out features
F2 = 10               # fc2 out features (classes)

LANE = 128            # lane-padded width of all intermediates
W2_ROWS = K * LANE    # 640 : conv2 band blocks occupy wpack rows [0, 640)
W1_ROWS = K * H0      # 140 : conv1 im2col band occupies wpack rows [640, 780)
FC1_ROWS = P2 * LANE  # 512 : fc1 weight blocks occupy fcpack rows [0, 512)
FC2W_ROW = FC1_ROWS   # 512 .. 671 : fc2 weight (transposed), cols [0, 10)
FC1B_ROW = FC1_ROWS + F1   # 672 : fc1 bias row
FC2B_ROW = FC1B_ROW + 1    # 673 : fc2 bias row (cols [0, 10))


# ----------------------------------------------------------------------------
# Single fused Pallas kernel
# ----------------------------------------------------------------------------
def fused_lenet_kernel(xcol_ref, wpack_ref, selpack_ref, bias_ref, fcpack_ref,
                       o_ref):
    f32 = jnp.float32
    n_img = xcol_ref.shape[0] // H1
    npad = ((n_img + 7) // 8) * 8        # 8-aligned row block per pooled row

    # ---- conv1: ONE im2col matmul; even|odd width-pool halves in columns ---
    w1_band = wpack_ref[W2_ROWS:W2_ROWS + W1_ROWS, :]                 # (140,256)
    y1 = jnp.dot(xcol_ref[...], w1_band, preferred_element_type=f32)  # (N*24,256)
    pw1 = jnp.maximum(y1[:, :LANE], y1[:, LANE:])                     # width max

    # ---- pool1 height-max + conv2 shifted-row windows: ONE 0/1 select dot --
    half = K * n_img * H2                                             # 80
    t1 = jnp.dot(selpack_ref[0:2 * half, :], pw1,
                 preferred_element_type=f32)                          # (160,128)
    a_sh = jnp.maximum(jnp.maximum(t1[:half, :], t1[half:, :])
                       + bias_ref[0:1, :], 0.0)                       # (5*N*8,128)

    # ---- conv2: one band matmul per kernel row (even|odd pool in columns) --
    blk = n_img * H2                                                  # 16
    y2 = jnp.dot(a_sh[0:blk, :], wpack_ref[0:LANE, :],
                 preferred_element_type=f32)
    for di in range(1, K):
        y2 = y2 + jnp.dot(a_sh[di * blk:(di + 1) * blk, :],
                          wpack_ref[di * LANE:(di + 1) * LANE, :],
                          preferred_element_type=f32)                 # (N*8,256)
    pw2 = jnp.maximum(y2[:, :LANE], y2[:, LANE:])                     # (N*8,128)

    # ---- pool2 height-max select; rows ordered [pi*npad + n], 8-aligned ----
    sp2 = selpack_ref[2 * half:2 * half + 2 * P2 * npad, 0:blk]       # (64,16)
    t2 = jnp.dot(sp2, pw2, preferred_element_type=f32)                # (64,128)
    hh = P2 * npad
    a2 = jnp.maximum(jnp.maximum(t2[:hh, :], t2[hh:, :])
                     + bias_ref[1:2, :], 0.0)                         # (32,128)

    # ---- fc1 (NCHW flatten folded into per-pool-row weight blocks) + relu --
    h = jnp.dot(a2[0:npad, :], fcpack_ref[0:LANE, :],
                preferred_element_type=f32)
    for pi in range(1, P2):
        h = h + jnp.dot(a2[pi * npad:(pi + 1) * npad, :],
                        fcpack_ref[pi * LANE:(pi + 1) * LANE, :],
                        preferred_element_type=f32)                   # (npad,160)
    h = jnp.maximum(h + fcpack_ref[FC1B_ROW:FC1B_ROW + 1, :], 0.0)

    # ---- fc2 (+bias); rows >= n_img are padding and dropped by the slice ---
    logits = (jnp.dot(h, fcpack_ref[FC2W_ROW:FC2W_ROW + F1, 0:F2],
                      preferred_element_type=f32)
              + fcpack_ref[FC2B_ROW:FC2B_ROW + 1, 0:F2])              # (npad,10)
    o_ref[...] = logits[0:n_img, :]


# ----------------------------------------------------------------------------
# Host-side (numpy) constant folding.  Call ONCE per weight set / batch size,
# outside jit; pass the returned device arrays to the jitted forward.
# ----------------------------------------------------------------------------
def prepare_constants(params, n_img):
    w1 = np.asarray(params["w1"], np.float32)        # (10,1,5,5) OIHW
    b1 = np.asarray(params["b1"], np.float32)
    w2 = np.asarray(params["w2"], np.float32)        # (20,10,5,5)
    b2 = np.asarray(params["b2"], np.float32)
    fc1_w = np.asarray(params["fc1_w"], np.float32)  # (160,320)
    fc1_b = np.asarray(params["fc1_b"], np.float32)
    fc2_w = np.asarray(params["fc2_w"], np.float32)  # (10,160)
    fc2_b = np.asarray(params["fc2_b"], np.float32)
    npad = ((n_img + 7) // 8) * 8

    # conv1 im2col band: row di*28 + (2*pj+parity+dj), col parity*128+pj*10+co
    w1_band = np.zeros((W1_ROWS, 2 * LANE), np.float32)
    di, dj, pj, co = np.meshgrid(np.arange(K), np.arange(K),
                                 np.arange(P1), np.arange(C1), indexing="ij")
    vals1 = w1[:, 0][co, di, dj].ravel()
    for parity in (0, 1):
        rows = (di * H0 + 2 * pj + parity + dj).ravel()
        cols = (parity * LANE + pj * C1 + co).ravel()
        w1_band[rows, cols] = vals1

    # conv2 bands: one 128-row block per kernel row di
    w2_band = np.zeros((W2_ROWS, 2 * LANE), np.float32)
    di, dj, ci, pj, c2 = np.meshgrid(np.arange(K), np.arange(K), np.arange(C1),
                                     np.arange(P2), np.arange(C2), indexing="ij")
    vals2 = w2[c2, ci, di, dj].ravel()
    for parity in (0, 1):
        rows = (di * LANE + (2 * pj + parity + dj) * C1 + ci).ravel()
        cols = (parity * LANE + pj * C2 + c2).ravel()
        w2_band[rows, cols] = vals2

    wpack = np.concatenate([w2_band, w1_band], axis=0)                # (780,256)

    # pool1-height-max + conv2-row-shift fused 0/1 select (2*K*N*8, N*24)
    tsel = np.zeros((2 * K * n_img * H2, n_img * H1), np.float32)
    for parity in (0, 1):
        for d in range(K):
            for n in range(n_img):
                for i2 in range(H2):
                    r = (parity * (K * n_img * H2) + d * (n_img * H2)
                         + n * H2 + i2)
                    tsel[r, n * H1 + 2 * (i2 + d) + parity] = 1.0

    # pool2-height-max select; output blocks padded to npad rows per (par, pi)
    sp2 = np.zeros((2 * P2 * npad, n_img * H2), np.float32)
    for parity in (0, 1):
        for pi in range(P2):
            for n in range(n_img):
                r = parity * (P2 * npad) + pi * npad + n
                sp2[r, n * H2 + 2 * pi + parity] = 1.0

    selpack = np.zeros((tsel.shape[0] + sp2.shape[0], n_img * H1), np.float32)
    selpack[:tsel.shape[0], :] = tsel
    selpack[tsel.shape[0]:, :sp2.shape[1]] = sp2

    biaspack = np.zeros((2, LANE), np.float32)
    biaspack[0, :P1 * C1] = np.tile(b1, P1)     # a1 columns = pj*10 + co
    biaspack[1, :P2 * C2] = np.tile(b2, P2)     # a2 columns = pj*20 + c2

    # fc1 blocks (NCHW flatten c2*16 + pi*4 + pj folded in), fc2 weight, biases
    fcpack = np.zeros((FC2B_ROW + 1, F1), np.float32)
    w = fc1_w.reshape(F1, C2, P2, P2)                      # [f, c2, pi, pj]
    for pi in range(P2):
        blk = np.transpose(w[:, :, pi, :], (2, 1, 0)).reshape(P2 * C2, F1)
        fcpack[pi * LANE:pi * LANE + P2 * C2, :] = blk     # rows pj*20 + c2
    fcpack[FC2W_ROW:FC2W_ROW + F1, :F2] = fc2_w.T
    fcpack[FC1B_ROW, :] = fc1_b
    fcpack[FC2B_ROW, :F2] = fc2_b

    return (jnp.asarray(wpack), jnp.asarray(selpack),
            jnp.asarray(biaspack), jnp.asarray(fcpack))


# ----------------------------------------------------------------------------
# Jitted per-call path: row-im2col of the input + one fused pallas_call.
# ----------------------------------------------------------------------------
def model_forward_pallas(x_nchw, wpack, selpack, biaspack, fcpack):
    n_img = x_nchw.shape[0]
    x3 = x_nchw[:, 0].astype(jnp.float32)                             # (N,28,28)
    # Kernel-row shifts built here (cheap XLA slices) so the kernel never
    # performs sublane-misaligned slicing/concatenation.
    x_col = jnp.concatenate([x3[:, d:d + H1, :] for d in range(K)], axis=2)
    x_col = x_col.reshape(n_img * H1, K * H0)                         # (N*24,140)

    vmem = pl.BlockSpec(memory_space=pltpu.MemorySpace.VMEM)
    return pl.pallas_call(
        fused_lenet_kernel,
        out_shape=jax.ShapeDtypeStruct((n_img, F2), jnp.float32),
        in_specs=[vmem] * 5,
        out_specs=vmem,
    )(x_col, wpack, selpack, biaspack, fcpack)


# ----------------------------------------------------------------------------
# Pure-JAX reference (for verification)
# ----------------------------------------------------------------------------
def reference_forward(x_nchw, params):
    def conv_block(x, w, b):
        y = jax.lax.conv_general_dilated(
            x, w, window_strides=(1, 1), padding="VALID",
            dimension_numbers=("NCHW", "OIHW", "NCHW"))
        y = y + b[None, :, None, None]
        y = jax.lax.reduce_window(y, -jnp.inf, jax.lax.max,
                                  (1, 1, 2, 2), (1, 1, 2, 2), "VALID")
        return jnp.maximum(y, 0.0)

    y = conv_block(x_nchw, params["w1"], params["b1"])
    y = conv_block(y, params["w2"], params["b2"])
    y = y.reshape(y.shape[0], -1)
    y = jnp.maximum(y @ params["fc1_w"].T + params["fc1_b"], 0.0)
    return y @ params["fc2_w"].T + params["fc2_b"]


# ----------------------------------------------------------------------------
if __name__ == "__main__":
    key = jax.random.PRNGKey(0)
    ks = jax.random.split(key, 9)
    params = {
        "w1": jax.random.normal(ks[0], (10, 1, 5, 5), jnp.float32) * 0.2,
        "b1": jax.random.normal(ks[1], (10,), jnp.float32) * 0.1,
        "w2": jax.random.normal(ks[2], (20, 10, 5, 5), jnp.float32) * 0.1,
        "b2": jax.random.normal(ks[3], (20,), jnp.float32) * 0.1,
        "fc1_w": jax.random.normal(ks[4], (160, 320), jnp.float32) * 0.05,
        "fc1_b": jax.random.normal(ks[5], (160,), jnp.float32) * 0.05,
        "fc2_w": jax.random.normal(ks[6], (10, 160), jnp.float32) * 0.05,
        "fc2_b": jax.random.normal(ks[7], (10,), jnp.float32) * 0.05,
    }
    # Model requires 28x28 input (fc1 expects 20*4*4 features); batch = 2.
    x = jax.random.normal(ks[8], (2, 1, 28, 28), jnp.float32)

    # Constants built once, host-side (outside the per-call jit path).
    consts = prepare_constants(params, n_img=x.shape[0])

    fwd = jax.jit(model_forward_pallas)
    out = jax.block_until_ready(fwd(x, *consts))
    ref = jax.block_until_ready(reference_forward(x, params))

    assert out.shape == (2, 10), out.shape
    # Tolerance accounts for MXU default (bf16-pass) f32 matmul precision with
    # a different summation/decomposition than the XLA reference.
    assert jnp.allclose(out, ref, rtol=2e-2, atol=2e-2), (
        f"max abs err {jnp.max(jnp.abs(out - ref))}")
    print("KERNEL_OK")
</pallas_src>

<mosaic_0001>
module attributes {stable_mosaic.version = 11 : i64} {
  func.func @fused_lenet_kernel(%arg0: memref<48x140xf32, #tpu.memory_space<vmem>>, %arg1: memref<780x256xf32, #tpu.memory_space<vmem>>, %arg2: memref<224x48xf32, #tpu.memory_space<vmem>>, %arg3: memref<2x128xf32, #tpu.memory_space<vmem>>, %arg4: memref<674x160xf32, #tpu.memory_space<vmem>>, %arg5: memref<2x10xf32, #tpu.memory_space<vmem>>) attributes {dimension_semantics = [], scalar_prefetch = 0 : i64, scratch_operands = 0 : i64, tpu.core_type = #tpu.core_type<tc>} {
    %c640 = arith.constant 640 : index
    %c0 = arith.constant 0 : index
    %0 = vector.load %arg1[%c640, %c0] : memref<780x256xf32, #tpu.memory_space<vmem>>, vector<140x256xf32>
    %c0_0 = arith.constant 0 : index
    %c0_1 = arith.constant 0 : index
    %1 = vector.load %arg0[%c0_0, %c0_1] : memref<48x140xf32, #tpu.memory_space<vmem>>, vector<48x140xf32>
    %cst = arith.constant dense<0.000000e+00> : vector<48x256xf32>
    %2 = tpu.matmul %1, %0, %cst {dimension_numbers = #tpu.dot_dimension_numbers<[1], [0], [0], [1], [0, 0, 1, 1], [], []>} : vector<48x140xf32>, vector<140x256xf32>, vector<48x256xf32> -> vector<48x256xf32>
    %3 = vector.extract_strided_slice %2 {offsets = [0, 0], sizes = [48, 128], strides = [1, 1]} : vector<48x256xf32> to vector<48x128xf32>
    %4 = vector.extract_strided_slice %2 {offsets = [0, 128], sizes = [48, 128], strides = [1, 1]} : vector<48x256xf32> to vector<48x128xf32>
    %5 = arith.maximumf %3, %4 : vector<48x128xf32>
    %c0_2 = arith.constant 0 : index
    %c0_3 = arith.constant 0 : index
    %6 = vector.load %arg2[%c0_2, %c0_3] : memref<224x48xf32, #tpu.memory_space<vmem>>, vector<160x48xf32>
    %cst_4 = arith.constant dense<0.000000e+00> : vector<160x128xf32>
    %7 = tpu.matmul %6, %5, %cst_4 {dimension_numbers = #tpu.dot_dimension_numbers<[1], [0], [0], [1], [0, 0, 1, 1], [], []>} : vector<160x48xf32>, vector<48x128xf32>, vector<160x128xf32> -> vector<160x128xf32>
    %8 = vector.extract_strided_slice %7 {offsets = [0, 0], sizes = [80, 128], strides = [1, 1]} : vector<160x128xf32> to vector<80x128xf32>
    %9 = vector.extract_strided_slice %7 {offsets = [80, 0], sizes = [80, 128], strides = [1, 1]} : vector<160x128xf32> to vector<80x128xf32>
    %10 = arith.maximumf %8, %9 : vector<80x128xf32>
    %c0_5 = arith.constant 0 : index
    %c0_6 = arith.constant 0 : index
    %11 = vector.load %arg3[%c0_5, %c0_6] : memref<2x128xf32, #tpu.memory_space<vmem>>, vector<1x128xf32>
    %12 = vector.broadcast %11 : vector<1x128xf32> to vector<80x128xf32>
    %13 = arith.addf %10, %12 : vector<80x128xf32>
    %cst_7 = arith.constant 0.000000e+00 : f32
    %14 = vector.broadcast %cst_7 : f32 to vector<80x128xf32>
    %15 = arith.maximumf %13, %14 : vector<80x128xf32>
    %16 = vector.extract_strided_slice %15 {offsets = [0, 0], sizes = [16, 128], strides = [1, 1]} : vector<80x128xf32> to vector<16x128xf32>
    %c0_8 = arith.constant 0 : index
    %c0_9 = arith.constant 0 : index
    %17 = vector.load %arg1[%c0_8, %c0_9] : memref<780x256xf32, #tpu.memory_space<vmem>>, vector<128x256xf32>
    %cst_10 = arith.constant dense<0.000000e+00> : vector<16x256xf32>
    %18 = tpu.matmul %16, %17, %cst_10 {dimension_numbers = #tpu.dot_dimension_numbers<[1], [0], [0], [1], [0, 0, 1, 1], [], []>} : vector<16x128xf32>, vector<128x256xf32>, vector<16x256xf32> -> vector<16x256xf32>
    %19 = vector.extract_strided_slice %15 {offsets = [16, 0], sizes = [16, 128], strides = [1, 1]} : vector<80x128xf32> to vector<16x128xf32>
    %c128 = arith.constant 128 : index
    %c0_11 = arith.constant 0 : index
    %20 = vector.load %arg1[%c128, %c0_11] : memref<780x256xf32, #tpu.memory_space<vmem>>, vector<128x256xf32>
    %cst_12 = arith.constant dense<0.000000e+00> : vector<16x256xf32>
    %21 = tpu.matmul %19, %20, %cst_12 {dimension_numbers = #tpu.dot_dimension_numbers<[1], [0], [0], [1], [0, 0, 1, 1], [], []>} : vector<16x128xf32>, vector<128x256xf32>, vector<16x256xf32> -> vector<16x256xf32>
    %22 = arith.addf %18, %21 : vector<16x256xf32>
    %23 = vector.extract_strided_slice %15 {offsets = [32, 0], sizes = [16, 128], strides = [1, 1]} : vector<80x128xf32> to vector<16x128xf32>
    %c256 = arith.constant 256 : index
    %c0_13 = arith.constant 0 : index
    %24 = vector.load %arg1[%c256, %c0_13] : memref<780x256xf32, #tpu.memory_space<vmem>>, vector<128x256xf32>
    %cst_14 = arith.constant dense<0.000000e+00> : vector<16x256xf32>
    %25 = tpu.matmul %23, %24, %cst_14 {dimension_numbers = #tpu.dot_dimension_numbers<[1], [0], [0], [1], [0, 0, 1, 1], [], []>} : vector<16x128xf32>, vector<128x256xf32>, vector<16x256xf32> -> vector<16x256xf32>
    %26 = arith.addf %22, %25 : vector<16x256xf32>
    %27 = vector.extract_strided_slice %15 {offsets = [48, 0], sizes = [16, 128], strides = [1, 1]} : vector<80x128xf32> to vector<16x128xf32>
    %c384 = arith.constant 384 : index
    %c0_15 = arith.constant 0 : index
    %28 = vector.load %arg1[%c384, %c0_15] : memref<780x256xf32, #tpu.memory_space<vmem>>, vector<128x256xf32>
    %cst_16 = arith.constant dense<0.000000e+00> : vector<16x256xf32>
    %29 = tpu.matmul %27, %28, %cst_16 {dimension_numbers = #tpu.dot_dimension_numbers<[1], [0], [0], [1], [0, 0, 1, 1], [], []>} : vector<16x128xf32>, vector<128x256xf32>, vector<16x256xf32> -> vector<16x256xf32>
    %30 = arith.addf %26, %29 : vector<16x256xf32>
    %31 = vector.extract_strided_slice %15 {offsets = [64, 0], sizes = [16, 128], strides = [1, 1]} : vector<80x128xf32> to vector<16x128xf32>
    %c512 = arith.constant 512 : index
    %c0_17 = arith.constant 0 : index
    %32 = vector.load %arg1[%c512, %c0_17] : memref<780x256xf32, #tpu.memory_space<vmem>>, vector<128x256xf32>
    %cst_18 = arith.constant dense<0.000000e+00> : vector<16x256xf32>
    %33 = tpu.matmul %31, %32, %cst_18 {dimension_numbers = #tpu.dot_dimension_numbers<[1], [0], [0], [1], [0, 0, 1, 1], [], []>} : vector<16x128xf32>, vector<128x256xf32>, vector<16x256xf32> -> vector<16x256xf32>
    %34 = arith.addf %30, %33 : vector<16x256xf32>
    %35 = vector.extract_strided_slice %34 {offsets = [0, 0], sizes = [16, 128], strides = [1, 1]} : vector<16x256xf32> to vector<16x128xf32>
    %36 = vector.extract_strided_slice %34 {offsets = [0, 128], sizes = [16, 128], strides = [1, 1]} : vector<16x256xf32> to vector<16x128xf32>
    %37 = arith.maximumf %35, %36 : vector<16x128xf32>
    %c160 = arith.constant 160 : index
    %c0_19 = arith.constant 0 : index
    %38 = vector.load %arg2[%c160, %c0_19] : memref<224x48xf32, #tpu.memory_space<vmem>>, vector<64x16xf32>
    %cst_20 = arith.constant dense<0.000000e+00> : vector<64x128xf32>
    %39 = tpu.matmul %38, %37, %cst_20 {dimension_numbers = #tpu.dot_dimension_numbers<[1], [0], [0], [1], [0, 0, 1, 1], [], []>} : vector<64x16xf32>, vector<16x128xf32>, vector<64x128xf32> -> vector<64x128xf32>
    %40 = vector.extract_strided_slice %39 {offsets = [0, 0], sizes = [32, 128], strides = [1, 1]} : vector<64x128xf32> to vector<32x128xf32>
    %41 = vector.extract_strided_slice %39 {offsets = [32, 0], sizes = [32, 128], strides = [1, 1]} : vector<64x128xf32> to vector<32x128xf32>
    %42 = arith.maximumf %40, %41 : vector<32x128xf32>
    %c1 = arith.constant 1 : index
    %c0_21 = arith.constant 0 : index
    %43 = vector.load %arg3[%c1, %c0_21] : memref<2x128xf32, #tpu.memory_space<vmem>>, vector<1x128xf32>
    %44 = vector.broadcast %43 : vector<1x128xf32> to vector<32x128xf32>
    %45 = arith.addf %42, %44 : vector<32x128xf32>
    %cst_22 = arith.constant 0.000000e+00 : f32
    %46 = vector.broadcast %cst_22 : f32 to vector<32x128xf32>
    %47 = arith.maximumf %45, %46 : vector<32x128xf32>
    %48 = vector.extract_strided_slice %47 {offsets = [0, 0], sizes = [8, 128], strides = [1, 1]} : vector<32x128xf32> to vector<8x128xf32>
    %c0_23 = arith.constant 0 : index
    %c0_24 = arith.constant 0 : index
    %49 = vector.load %arg4[%c0_23, %c0_24] : memref<674x160xf32, #tpu.memory_space<vmem>>, vector<128x160xf32>
    %cst_25 = arith.constant dense<0.000000e+00> : vector<8x160xf32>
    %50 = tpu.matmul %48, %49, %cst_25 {dimension_numbers = #tpu.dot_dimension_numbers<[1], [0], [0], [1], [0, 0, 1, 1], [], []>} : vector<8x128xf32>, vector<128x160xf32>, vector<8x160xf32> -> vector<8x160xf32>
    %51 = vector.extract_strided_slice %47 {offsets = [8, 0], sizes = [8, 128], strides = [1, 1]} : vector<32x128xf32> to vector<8x128xf32>
    %c128_26 = arith.constant 128 : index
    %c0_27 = arith.constant 0 : index
    %52 = vector.load %arg4[%c128_26, %c0_27] : memref<674x160xf32, #tpu.memory_space<vmem>>, vector<128x160xf32>
    %cst_28 = arith.constant dense<0.000000e+00> : vector<8x160xf32>
    %53 = tpu.matmul %51, %52, %cst_28 {dimension_numbers = #tpu.dot_dimension_numbers<[1], [0], [0], [1], [0, 0, 1, 1], [], []>} : vector<8x128xf32>, vector<128x160xf32>, vector<8x160xf32> -> vector<8x160xf32>
    %54 = arith.addf %50, %53 : vector<8x160xf32>
    %55 = vector.extract_strided_slice %47 {offsets = [16, 0], sizes = [8, 128], strides = [1, 1]} : vector<32x128xf32> to vector<8x128xf32>
    %c256_29 = arith.constant 256 : index
    %c0_30 = arith.constant 0 : index
    %56 = vector.load %arg4[%c256_29, %c0_30] : memref<674x160xf32, #tpu.memory_space<vmem>>, vector<128x160xf32>
    %cst_31 = arith.constant dense<0.000000e+00> : vector<8x160xf32>
    %57 = tpu.matmul %55, %56, %cst_31 {dimension_numbers = #tpu.dot_dimension_numbers<[1], [0], [0], [1], [0, 0, 1, 1], [], []>} : vector<8x128xf32>, vector<128x160xf32>, vector<8x160xf32> -> vector<8x160xf32>
    %58 = arith.addf %54, %57 : vector<8x160xf32>
    %59 = vector.extract_strided_slice %47 {offsets = [24, 0], sizes = [8, 128], strides = [1, 1]} : vector<32x128xf32> to vector<8x128xf32>
    %c384_32 = arith.constant 384 : index
    %c0_33 = arith.constant 0 : index
    %60 = vector.load %arg4[%c384_32, %c0_33] : memref<674x160xf32, #tpu.memory_space<vmem>>, vector<128x160xf32>
    %cst_34 = arith.constant dense<0.000000e+00> : vector<8x160xf32>
    %61 = tpu.matmul %59, %60, %cst_34 {dimension_numbers = #tpu.dot_dimension_numbers<[1], [0], [0], [1], [0, 0, 1, 1], [], []>} : vector<8x128xf32>, vector<128x160xf32>, vector<8x160xf32> -> vector<8x160xf32>
    %62 = arith.addf %58, %61 : vector<8x160xf32>
    %c672 = arith.constant 672 : index
    %c0_35 = arith.constant 0 : index
    %63 = vector.load %arg4[%c672, %c0_35] : memref<674x160xf32, #tpu.memory_space<vmem>>, vector<1x160xf32>
    %64 = vector.broadcast %63 : vector<1x160xf32> to vector<8x160xf32>
    %65 = arith.addf %62, %64 : vector<8x160xf32>
    %cst_36 = arith.constant 0.000000e+00 : f32
    %66 = vector.broadcast %cst_36 : f32 to vector<8x160xf32>
    %67 = arith.maximumf %65, %66 : vector<8x160xf32>
    %c512_37 = arith.constant 512 : index
    %c0_38 = arith.constant 0 : index
    %68 = vector.load %arg4[%c512_37, %c0_38] : memref<674x160xf32, #tpu.memory_space<vmem>>, vector<160x10xf32>
    %cst_39 = arith.constant dense<0.000000e+00> : vector<8x10xf32>
    %69 = tpu.matmul %67, %68, %cst_39 {dimension_numbers = #tpu.dot_dimension_numbers<[1], [0], [0], [1], [0, 0, 1, 1], [], []>} : vector<8x160xf32>, vector<160x10xf32>, vector<8x10xf32> -> vector<8x10xf32>
    %c673 = arith.constant 673 : index
    %c0_40 = arith.constant 0 : index
    %70 = vector.load %arg4[%c673, %c0_40] : memref<674x160xf32, #tpu.memory_space<vmem>>, vector<1x10xf32>
    %71 = vector.broadcast %70 : vector<1x10xf32> to vector<8x10xf32>
    %72 = arith.addf %69, %71 : vector<8x10xf32>
    %73 = vector.extract_strided_slice %72 {offsets = [0, 0], sizes = [2, 10], strides = [1, 1]} : vector<8x10xf32> to vector<2x10xf32>
    %c0_41 = arith.constant 0 : index
    %c0_42 = arith.constant 0 : index
    %74 = vector.load %arg5[%c0_41, %c0_42] : memref<2x10xf32, #tpu.memory_space<vmem>>, vector<2x10xf32>
    tpu.vector_store %arg5[%c0_41, %c0_42], %73 {strides = array<i32>} : memref<2x10xf32, #tpu.memory_space<vmem>>, vector<2x10xf32>,
    return
  }
}

</mosaic_0001>

<llo_original>
// kernel: model_forward_pallas.1
$region0: #{model_forward_pallas.1}
  #allocation0 [shape = 'u32[]', space=smem, size = 0x4, offset = 0x4, fixed_abs, tag = 'smem constant byte address 0x4 - core index']
  #allocation1 [shape = 'u32[144,128]{1,0:T(1,128)}', space=vmem, size = 0x12000, scoped, tag = 'internal scratch']
  %s0 = inlined_call_operand.vmem [shape: f32[48,140], index: 0, kind: input, shape index: {}]
  %s1 = inlined_call_operand.vmem [shape: f32[780,256], index: 1, kind: input, shape index: {}]
  %s2 = inlined_call_operand.vmem [shape: f32[224,48], index: 2, kind: input, shape index: {}]
  %s3 = inlined_call_operand.vmem [shape: f32[2,128], index: 3, kind: input, shape index: {}]
  %s4 = inlined_call_operand.vmem [shape: f32[674,160], index: 4, kind: input, shape index: {}]
  %s5 = inlined_call_operand.hbm [shape: f32[2,10], index: 5, kind: output, shape index: {}]
  %s6 = sld [smem:[#allocation0]]
  $region30: #{model_forward_pallas.1} parent=0
    _
  %s8 = ssub.s32 1, %s6
  %s9 = scalar_select 0, %s8, %s6
  $region1: #{model_forward_pallas.1} parent=0
    #allocation2 [shape = 'u8[1024]{0}', space=vmem, size = 0x400, scoped, tag = 'output window, operand 0, single buffered']
    #allocation3 [shape = 's32[1]{0}', space=sflag, size = 0x4, scoped, tag = 'scoped memory for model_forward_pallas.1']
    %10 = vsyncpa [#allocation3], 0
    // Predicated region
    $region2: #{model_forward_pallas.1} parent=1 // pred_check
      _
    $region3: #{model_forward_pallas.1} parent=1 // pred_check_branch
      %12 = sbr.rel (0) target = $region5
    $region4: #{model_forward_pallas.1} parent=1 // pred_region
      _
    $region5: #{model_forward_pallas.1} parent=1 // pred_fallthru
      _
    // Predicated region
    $region6: #{model_forward_pallas.1} parent=1 // pred_check
      _
    $region7: #{model_forward_pallas.1} parent=1 // pred_check_branch
      %14 = sbr.rel (0) target = $region9
    $region8: #{model_forward_pallas.1} parent=1 // pred_region
      _
    $region9: #{model_forward_pallas.1} parent=1 // pred_fallthru
      _
    // Predicated region
    $region10: #{model_forward_pallas.1} parent=1 // pred_check
      _
    $region11: #{model_forward_pallas.1} parent=1 // pred_check_branch
      %16 = sbr.rel (0) target = $region13
    $region12: #{model_forward_pallas.1} parent=1 // pred_region
      _
    $region13: #{model_forward_pallas.1} parent=1 // pred_fallthru
      _
    // Predicated region
    $region14: #{model_forward_pallas.1} parent=1 // pred_check
      _
    $region15: #{model_forward_pallas.1} parent=1 // pred_check_branch
      %18 = sbr.rel (0) target = $region17
    $region16: #{model_forward_pallas.1} parent=1 // pred_region
      _
    $region17: #{model_forward_pallas.1} parent=1 // pred_fallthru
      _
    // Predicated region
    $region18: #{model_forward_pallas.1} parent=1 // pred_check
      _
    $region19: #{model_forward_pallas.1} parent=1 // pred_check_branch
      %20 = sbr.rel (0) target = $region21
    $region20: #{model_forward_pallas.1} parent=1 // pred_region
      _
    $region21: #{model_forward_pallas.1} parent=1 // pred_fallthru
      _
    %v21 = vld [vmem:[%s1 + $0x500] sm:$0xff]
    %v22 = vld [vmem:[%s1 + $0x508] sm:$0xff]
    %v23 = vld [vmem:[%s1 + $0x510] sm:$0xff]
    %v24 = vld [vmem:[%s1 + $0x518] sm:$0xff]
    %v25 = vld [vmem:[%s1 + $0x520] sm:$0xff]
    %v26 = vld [vmem:[%s1 + $0x528] sm:$0xff]
    %v27 = vld [vmem:[%s1 + $0x530] sm:$0xff]
    %v28 = vld [vmem:[%s1 + $0x538] sm:$0xff]
    %v29 = vld [vmem:[%s1 + $0x540] sm:$0xff]
    %v30 = vld [vmem:[%s1 + $0x548] sm:$0xff]
    %v31 = vld [vmem:[%s1 + $0x550] sm:$0xff]
    %v32 = vld [vmem:[%s1 + $0x558] sm:$0xff]
    %v33 = vld [vmem:[%s1 + $0x560] sm:$0xff]
    %v34 = vld [vmem:[%s1 + $0x568] sm:$0xff]
    %v35 = vld [vmem:[%s1 + $0x570] sm:$0xff]
    %v36 = vld [vmem:[%s1 + $0x578] sm:$0xff]
    %v37 = vld [vmem:[%s1 + $0x580] sm:$0xff]
    %v38 = vld [vmem:[%s1 + $0x588] sm:$0xff]
    %v39 = vld [vmem:[%s1 + $0x590] sm:$0xff]
    %v40 = vld [vmem:[%s1 + $0x598] sm:$0xff]
    %v41 = vld [vmem:[%s1 + $0x5a0] sm:$0xff]
    %v42 = vld [vmem:[%s1 + $0x5a8] sm:$0xff]
    %v43 = vld [vmem:[%s1 + $0x5b0] sm:$0xff]
    %v44 = vld [vmem:[%s1 + $0x5b8] sm:$0xff]
    %v45 = vld [vmem:[%s1 + $0x5c0] sm:$0xff]
    %v46 = vld [vmem:[%s1 + $0x5c8] sm:$0xff]
    %v47 = vld [vmem:[%s1 + $0x5d0] sm:$0xff]
    %v48 = vld [vmem:[%s1 + $0x5d8] sm:$0xff]
    %v49 = vld [vmem:[%s1 + $0x5e0] sm:$0xff]
    %v50 = vld [vmem:[%s1 + $0x5e8] sm:$0xff]
    %v51 = vld [vmem:[%s1 + $0x5f0] sm:$0xff]
    %v52 = vld [vmem:[%s1 + $0x5f8] sm:$0xff]
    %v53 = vld [vmem:[%s1 + $0x600] sm:$0xff]
    %v54 = vld [vmem:[%s1 + $0x608] sm:$0xff]
    %v55 = vld [vmem:[%s1 + $0x610] sm:$0xf]
    %v56 = vld [vmem:[%s1 + $0x618] sm:$0xf]
    %v57 = vld [vmem:[%s0] sm:$0xff]
    %v58 = vld [vmem:[%s0 + $0x8] sm:$0xff]
    %v59 = vld [vmem:[%s0 + $0x10] sm:$0xff]
    %v60 = vld [vmem:[%s0 + $0x18] sm:$0xff]
    %v61 = vld [vmem:[%s0 + $0x20] sm:$0xff]
    %v62 = vld [vmem:[%s0 + $0x28] sm:$0xff]
    %v63 = vld [vmem:[%s0 + $0x30] sm:$0xff]
    %v64 = vld [vmem:[%s0 + $0x38] sm:$0xff]
    %v65 = vld [vmem:[%s0 + $0x40] sm:$0xff]
    %v66 = vld [vmem:[%s0 + $0x48] sm:$0xff]
    %v67 = vld [vmem:[%s0 + $0x50] sm:$0xff]
    %v68 = vld [vmem:[%s0 + $0x58] sm:$0xff]
    %vm69 = vcmask 97280
    %v71 = vsel %vm69, %v58, 0
    %v74 = vsel %vm69, %v60, 0
    %v77 = vsel %vm69, %v62, 0
    %v80 = vsel %vm69, %v64, 0
    %v83 = vsel %vm69, %v66, 0
    %v86 = vsel %vm69, %v68, 0
    %vm88 = vcmask 1043456
    %v90 = vsel %vm88, %v55, 0
    %v93 = vsel %vm88, %v56, 0
    %95 = vmatprep.subr.mxu0 %v52
    %96 = vmatpush1.msra.mxu0 %v51
    %97 = vmatprep.subr.mxu0 %v50
    %98 = vmatpush1.msra.mxu0 %v49
    %99 = vmatprep.subr.mxu0 %v48
    %100 = vmatpush1.msra.mxu0 %v47
    %101 = vmatprep.subr.mxu0 %v46
    %102 = vmatpush1.msra.mxu0 %v45
    %103 = vmatprep.subr.mxu0 %v44
    %104 = vmatpush1.msra.mxu0 %v43
    %105 = vmatprep.subr.mxu0 %v42
    %106 = vmatpush1.msra.mxu0 %v41
    %107 = vmatprep.subr.mxu0 %v40
    %108 = vmatpush1.msra.mxu0 %v39
    %109 = vmatprep.subr.mxu0 %v38
    %110 = vmatpush1.msra.mxu0 %v37
    %111 = vmatprep.subr.mxu0 %v36
    %112 = vmatpush1.msra.mxu0 %v35
    %113 = vmatprep.subr.mxu0 %v34
    %114 = vmatpush1.msra.mxu0 %v33
    %115 = vmatprep.subr.mxu0 %v32
    %116 = vmatpush1.msra.mxu0 %v31
    %117 = vmatprep.subr.mxu0 %v30
    %118 = vmatpush1.msra.mxu0 %v29
    %119 = vmatprep.subr.mxu0 %v28
    %120 = vmatpush1.msra.mxu0 %v27
    %121 = vmatprep.subr.mxu0 %v26
    %122 = vmatpush1.msra.mxu0 %v25
    %123 = vmatprep.subr.mxu0 %v24
    %124 = vmatpush1.msra.mxu0 %v23
    %125 = vmatprep.subr.mxu0 %v22
    %126 = vmatpush1.msra.mxu0 %v21
    %127 = vmatprep.subr.mxu0 0.0
    %128 = vmatpush2.msra.mxu0 0.0
    %129 = vmatprep.subr.mxu0 0.0
    %130 = vmatpush2.msra.mxu0 0.0
    %131 = vmatprep.subr.mxu0 0.0
    %132 = vmatpush2.msra.mxu0 0.0
    %133 = vmatprep.subr.mxu0 0.0
    %134 = vmatpush2.msra.mxu0 0.0
    %135 = vmatprep.subr.mxu0 0.0
    %136 = vmatpush2.msra.mxu0 0.0
    %137 = vmatprep.subr.mxu0 0.0
    %138 = vmatpush2.msra.mxu0 0.0
    %139 = vmatprep.subr.mxu0 0.0
    %140 = vmatpush2.msra.mxu0 0.0
    %141 = vmatprep.subr.mxu0 0.0
    %142 = vmatpush2.msra.mxu0 0.0
    %143 = vmatprep.subr.mxu0 0.0
    %144 = vmatpush2.msra.mxu0 0.0
    %145 = vmatprep.subr.mxu0 0.0
    %146 = vmatpush2.msra.mxu0 0.0
    %147 = vmatprep.subr.mxu0 0.0
    %148 = vmatpush2.msra.mxu0 0.0
    %149 = vmatprep.subr.mxu0 0.0
    %150 = vmatpush2.msra.mxu0 0.0
    %151 = vmatprep.subr.mxu0 0.0
    %152 = vmatpush2.msra.mxu0 0.0
    %153 = vmatprep.subr.mxu0 0.0
    %154 = vmatpush2.msra.mxu0 0.0
    %155 = vmatprep.subr.mxu0 %v93
    %156 = vmatpush2.msra.mxu0 %v90
    %157 = vmatprep.subr.mxu0 %v54
    %158 = vmatpush2.msra.mxu0 %v53
    %159 = vmatprep.mubr.f32.mxu0 %v71
    %160 = vmatmul.mubr.f32.gmra.mxu0 %v57
    %v161 = vpop.f32.mrf.mxu0
    %v162 = vadd.f32 0.0, %v161
    %v163 = vpop.f32.mrf.mxu0
    %v164 = vadd.f32 0.0, %v163
    %165 = vmatprep.mubr.f32.mxu0 %v74
    %166 = vmatmul.mubr.f32.gmra.mxu0 %v59
    %v167 = vpop.f32.mrf.mxu0
    %v168 = vadd.f32 0.0, %v167
    %v169 = vpop.f32.mrf.mxu0
    %v170 = vadd.f32 0.0, %v169
    %171 = vmatprep.mubr.f32.mxu0 %v77
    %172 = vmatmul.mubr.f32.gmra.mxu0 %v61
    %v173 = vpop.f32.mrf.mxu0
    %v174 = vadd.f32 0.0, %v173
    %v175 = vpop.f32.mrf.mxu0
    %v176 = vadd.f32 0.0, %v175
    %177 = vmatprep.mubr.f32.mxu0 %v80
    %178 = vmatmul.mubr.f32.gmra.mxu0 %v63
    %v179 = vpop.f32.mrf.mxu0
    %v180 = vadd.f32 0.0, %v179
    %v181 = vpop.f32.mrf.mxu0
    %v182 = vadd.f32 0.0, %v181
    %183 = vmatprep.mubr.f32.mxu0 %v83
    %184 = vmatmul.mubr.f32.gmra.mxu0 %v65
    %v185 = vpop.f32.mrf.mxu0
    %v186 = vadd.f32 0.0, %v185
    %v187 = vpop.f32.mrf.mxu0
    %v188 = vadd.f32 0.0, %v187
    %189 = vmatprep.mubr.f32.mxu0 %v86
    %190 = vmatmul.mubr.f32.gmra.mxu0 %v67
    %v191 = vpop.f32.mrf.mxu0
    %v192 = vadd.f32 0.0, %v191
    %v193 = vpop.f32.mrf.mxu0
    %v194 = vadd.f32 0.0, %v193
    %195 = vdwg.mxu0
    %v196 = vmax.f32 %v162, %v164
    %v197 = vmax.f32 %v168, %v170
    %v198 = vmax.f32 %v174, %v176
    %v199 = vmax.f32 %v180, %v182
    %v200 = vmax.f32 %v186, %v188
    %v201 = vmax.f32 %v192, %v194
    %v202 = vld [vmem:[%s2] sm:$0xff]
    %v203 = vld [vmem:[%s2 + $0x8] sm:$0xff]
    %v204 = vld [vmem:[%s2 + $0x10] sm:$0xff]
    %v205 = vld [vmem:[%s2 + $0x18] sm:$0xff]
    %v206 = vld [vmem:[%s2 + $0x20] sm:$0xff]
    %v207 = vld [vmem:[%s2 + $0x28] sm:$0xff]
    %v208 = vld [vmem:[%s2 + $0x30] sm:$0xff]
    %v209 = vld [vmem:[%s2 + $0x38] sm:$0xff]
    %v210 = vld [vmem:[%s2 + $0x40] sm:$0xff]
    %v211 = vld [vmem:[%s2 + $0x48] sm:$0xff]
    %v212 = vld [vmem:[%s2 + $0x50] sm:$0xff]
    %v213 = vld [vmem:[%s2 + $0x58] sm:$0xff]
    %v214 = vld [vmem:[%s2 + $0x60] sm:$0xff]
    %v215 = vld [vmem:[%s2 + $0x68] sm:$0xff]
    %v216 = vld [vmem:[%s2 + $0x70] sm:$0xff]
    %v217 = vld [vmem:[%s2 + $0x78] sm:$0xff]
    %v218 = vld [vmem:[%s2 + $0x80] sm:$0xff]
    %v219 = vld [vmem:[%s2 + $0x88] sm:$0xff]
    %v220 = vld [vmem:[%s2 + $0x90] sm:$0xff]
    %v221 = vld [vmem:[%s2 + $0x98] sm:$0xff]
    %vm222 = vcmask 392192
    %v224 = vsel %vm222, %v202, 0
    %v227 = vsel %vm222, %v203, 0
    %v230 = vsel %vm222, %v204, 0
    %v233 = vsel %vm222, %v205, 0
    %v236 = vsel %vm222, %v206, 0
    %v239 = vsel %vm222, %v207, 0
    %v242 = vsel %vm222, %v208, 0
    %v245 = vsel %vm222, %v209, 0
    %v248 = vsel %vm222, %v210, 0
    %v251 = vsel %vm222, %v211, 0
    %v254 = vsel %vm222, %v212, 0
    %v257 = vsel %vm222, %v213, 0
    %v260 = vsel %vm222, %v214, 0
    %v263 = vsel %vm222, %v215, 0
    %v266 = vsel %vm222, %v216, 0
    %v269 = vsel %vm222, %v217, 0
    %v272 = vsel %vm222, %v218, 0
    %v275 = vsel %vm222, %v219, 0
    %v278 = vsel %vm222, %v220, 0
    %v281 = vsel %vm222, %v221, 0
    %283 = vmatprep.subr.mxu0 0.0
    %284 = vmatpush1.msra.mxu0 0.0
    %285 = vmatprep.subr.mxu0 0.0
    %286 = vmatpush1.msra.mxu0 0.0
    %287 = vmatprep.subr.mxu0 0.0
    %288 = vmatpush1.msra.mxu0 0.0
    %289 = vmatprep.subr.mxu0 0.0
    %290 = vmatpush1.msra.mxu0 0.0
    %291 = vmatprep.subr.mxu0 0.0
    %292 = vmatpush1.msra.mxu0 0.0
    %293 = vmatprep.subr.mxu0 0.0
    %294 = vmatpush1.msra.mxu0 0.0
    %295 = vmatprep.subr.mxu0 0.0
    %296 = vmatpush1.msra.mxu0 0.0
    %297 = vmatprep.subr.mxu0 0.0
    %298 = vmatpush1.msra.mxu0 0.0
    %299 = vmatprep.subr.mxu0 0.0
    %300 = vmatpush1.msra.mxu0 0.0
    %301 = vmatprep.subr.mxu0 0.0
    %302 = vmatpush1.msra.mxu0 0.0
    %303 = vmatprep.subr.mxu0 0.0
    %304 = vmatpush1.msra.mxu0 %v201
    %305 = vmatprep.subr.mxu0 0.0
    %306 = vmatpush1.msra.mxu0 %v200
    %307 = vmatprep.subr.mxu0 0.0
    %308 = vmatpush1.msra.mxu0 %v199
    %309 = vmatprep.subr.mxu0 0.0
    %310 = vmatpush1.msra.mxu0 %v198
    %311 = vmatprep.subr.mxu0 0.0
    %312 = vmatpush1.msra.mxu0 %v197
    %313 = vmatprep.subr.mxu0 0.0
    %314 = vmatpush1.msra.mxu0 %v196
    %315 = vmatprep.subr.mxu0 0.0
    %316 = vmatpush2.msra.mxu0 0.0
    %317 = vmatprep.subr.mxu0 0.0
    %318 = vmatpush2.msra.mxu0 0.0
    %319 = vmatprep.subr.mxu0 0.0
    %320 = vmatpush2.msra.mxu0 0.0
    %321 = vmatprep.subr.mxu0 0.0
    %322 = vmatpush2.msra.mxu0 0.0
    %323 = vmatprep.subr.mxu0 0.0
    %324 = vmatpush2.msra.mxu0 0.0
    %325 = vmatprep.subr.mxu0 0.0
    %326 = vmatpush2.msra.mxu0 0.0
    %327 = vmatprep.subr.mxu0 0.0
    %328 = vmatpush2.msra.mxu0 0.0
    %329 = vmatprep.subr.mxu0 0.0
    %330 = vmatpush2.msra.mxu0 0.0
    %331 = vmatprep.subr.mxu0 0.0
    %332 = vmatpush2.msra.mxu0 0.0
    %333 = vmatprep.subr.mxu0 0.0
    %334 = vmatpush2.msra.mxu0 0.0
    %335 = vmatprep.subr.mxu0 0.0
    %336 = vmatpush2.msra.mxu0 0.0
    %337 = vmatprep.subr.mxu0 0.0
    %338 = vmatpush2.msra.mxu0 0.0
    %339 = vmatprep.subr.mxu0 0.0
    %340 = vmatpush2.msra.mxu0 0.0
    %341 = vmatprep.subr.mxu0 0.0
    %342 = vmatpush2.msra.mxu0 0.0
    %343 = vmatprep.subr.mxu0 0.0
    %344 = vmatpush2.msra.mxu0 0.0
    %345 = vmatprep.subr.mxu0 0.0
    %346 = vmatpush2.msra.mxu0 0.0
    %347 = vmatprep.mubr.f32.mxu0 0.0
    %348 = vmatmul.mubr.f32.gmra.mxu0 %v224
    %v349 = vpop.f32.mrf.mxu0
    %v350 = vadd.f32 0.0, %v349
    %v351 = vpop.f32.mrf.mxu0
    %352 = vmatprep.mubr.f32.mxu0 0.0
    %353 = vmatmul.mubr.f32.gmra.mxu0 %v227
    %v354 = vpop.f32.mrf.mxu0
    %v355 = vadd.f32 0.0, %v354
    %v356 = vpop.f32.mrf.mxu0
    %357 = vmatprep.mubr.f32.mxu0 0.0
    %358 = vmatmul.mubr.f32.gmra.mxu0 %v230
    %v359 = vpop.f32.mrf.mxu0
    %v360 = vadd.f32 0.0, %v359
    %v361 = vpop.f32.mrf.mxu0
    %362 = vmatprep.mubr.f32.mxu0 0.0
    %363 = vmatmul.mubr.f32.gmra.mxu0 %v233
    %v364 = vpop.f32.mrf.mxu0
    %v365 = vadd.f32 0.0, %v364
    %v366 = vpop.f32.mrf.mxu0
    %367 = vmatprep.mubr.f32.mxu0 0.0
    %368 = vmatmul.mubr.f32.gmra.mxu0 %v236
    %v369 = vpop.f32.mrf.mxu0
    %v370 = vadd.f32 0.0, %v369
    %v371 = vpop.f32.mrf.mxu0
    %372 = vmatprep.mubr.f32.mxu0 0.0
    %373 = vmatmul.mubr.f32.gmra.mxu0 %v239
    %v374 = vpop.f32.mrf.mxu0
    %v375 = vadd.f32 0.0, %v374
    %v376 = vpop.f32.mrf.mxu0
    %377 = vmatprep.mubr.f32.mxu0 0.0
    %378 = vmatmul.mubr.f32.gmra.mxu0 %v242
    %v379 = vpop.f32.mrf.mxu0
    %v380 = vadd.f32 0.0, %v379
    %v381 = vpop.f32.mrf.mxu0
    %382 = vmatprep.mubr.f32.mxu0 0.0
    %383 = vmatmul.mubr.f32.gmra.mxu0 %v245
    %v384 = vpop.f32.mrf.mxu0
    %v385 = vadd.f32 0.0, %v384
    %v386 = vpop.f32.mrf.mxu0
    %387 = vmatprep.mubr.f32.mxu0 0.0
    %388 = vmatmul.mubr.f32.gmra.mxu0 %v248
    %v389 = vpop.f32.mrf.mxu0
    %v390 = vadd.f32 0.0, %v389
    %v391 = vpop.f32.mrf.mxu0
    %392 = vmatprep.mubr.f32.mxu0 0.0
    %393 = vmatmul.mubr.f32.gmra.mxu0 %v251
    %v394 = vpop.f32.mrf.mxu0
    %v395 = vadd.f32 0.0, %v394
    %v396 = vpop.f32.mrf.mxu0
    %397 = vmatprep.mubr.f32.mxu0 0.0
    %398 = vmatmul.mubr.f32.gmra.mxu0 %v254
    %v399 = vpop.f32.mrf.mxu0
    %v400 = vadd.f32 0.0, %v399
    %v401 = vpop.f32.mrf.mxu0
    %402 = vmatprep.mubr.f32.mxu0 0.0
    %403 = vmatmul.mubr.f32.gmra.mxu0 %v257
    %v404 = vpop.f32.mrf.mxu0
    %v405 = vadd.f32 0.0, %v404
    %v406 = vpop.f32.mrf.mxu0
    %407 = vmatprep.mubr.f32.mxu0 0.0
    %408 = vmatmul.mubr.f32.gmra.mxu0 %v260
    %v409 = vpop.f32.mrf.mxu0
    %v410 = vadd.f32 0.0, %v409
    %v411 = vpop.f32.mrf.mxu0
    %412 = vmatprep.mubr.f32.mxu0 0.0
    %413 = vmatmul.mubr.f32.gmra.mxu0 %v263
    %v414 = vpop.f32.mrf.mxu0
    %v415 = vadd.f32 0.0, %v414
    %v416 = vpop.f32.mrf.mxu0
    %417 = vmatprep.mubr.f32.mxu0 0.0
    %418 = vmatmul.mubr.f32.gmra.mxu0 %v266
    %v419 = vpop.f32.mrf.mxu0
    %v420 = vadd.f32 0.0, %v419
    %v421 = vpop.f32.mrf.mxu0
    %422 = vmatprep.mubr.f32.mxu0 0.0
    %423 = vmatmul.mubr.f32.gmra.mxu0 %v269
    %v424 = vpop.f32.mrf.mxu0
    %v425 = vadd.f32 0.0, %v424
    %v426 = vpop.f32.mrf.mxu0
    %427 = vmatprep.mubr.f32.mxu0 0.0
    %428 = vmatmul.mubr.f32.gmra.mxu0 %v272
    %v429 = vpop.f32.mrf.mxu0
    %v430 = vadd.f32 0.0, %v429
    %v431 = vpop.f32.mrf.mxu0
    %432 = vmatprep.mubr.f32.mxu0 0.0
    %433 = vmatmul.mubr.f32.gmra.mxu0 %v275
    %v434 = vpop.f32.mrf.mxu0
    %v435 = vadd.f32 0.0, %v434
    %v436 = vpop.f32.mrf.mxu0
    %437 = vmatprep.mubr.f32.mxu0 0.0
    %438 = vmatmul.mubr.f32.gmra.mxu0 %v278
    %v439 = vpop.f32.mrf.mxu0
    %v440 = vadd.f32 0.0, %v439
    %v441 = vpop.f32.mrf.mxu0
    %442 = vmatprep.mubr.f32.mxu0 0.0
    %443 = vmatmul.mubr.f32.gmra.mxu0 %v281
    %v444 = vpop.f32.mrf.mxu0
    %v445 = vadd.f32 0.0, %v444
    %v446 = vpop.f32.mrf.mxu0
    %447 = vdwg.mxu0
    %v448 = vmax.f32 %v350, %v400
    %v449 = vmax.f32 %v355, %v405
    %v450 = vmax.f32 %v360, %v410
    %v451 = vmax.f32 %v365, %v415
    %v452 = vmax.f32 %v370, %v420
    %v453 = vmax.f32 %v375, %v425
    %v454 = vmax.f32 %v380, %v430
    %v455 = vmax.f32 %v385, %v435
    %v456 = vmax.f32 %v390, %v440
    %v457 = vmax.f32 %v395, %v445
    %v458 = vld [vmem:[%s3] sm:$0x1]
    %v459 = vlaneseq
    %v460 = vshrl.u32 %v459, 7
    %v461 = vsub.s32 0, %v460
    %v462 = vrot.slane %v458, %v461
    %v463 = vadd.f32 %v448, %v462
    %v464 = vadd.f32 %v449, %v462
    %v465 = vadd.f32 %v450, %v462
    %v466 = vadd.f32 %v451, %v462
    %v467 = vadd.f32 %v452, %v462
    %v468 = vadd.f32 %v453, %v462
    %v469 = vadd.f32 %v454, %v462
    %v470 = vadd.f32 %v455, %v462
    %v471 = vadd.f32 %v456, %v462
    %v472 = vadd.f32 %v457, %v462
    %v473 = vmax.f32 %v463, 0.0
    %v474 = vmax.f32 %v464, 0.0
    %v475 = vmax.f32 %v465, 0.0
    %v476 = vmax.f32 %v466, 0.0
    %v477 = vmax.f32 %v467, 0.0
    %v478 = vmax.f32 %v468, 0.0
    %v479 = vmax.f32 %v469, 0.0
    %v480 = vmax.f32 %v470, 0.0
    %v481 = vmax.f32 %v471, 0.0
    %v482 = vmax.f32 %v472, 0.0
    %v483 = vld [vmem:[%s1] sm:$0xff]
    %v484 = vld [vmem:[%s1 + $0x8] sm:$0xff]
    %v485 = vld [vmem:[%s1 + $0x10] sm:$0xff]
    %v486 = vld [vmem:[%s1 + $0x18] sm:$0xff]
    %v487 = vld [vmem:[%s1 + $0x20] sm:$0xff]
    %v488 = vld [vmem:[%s1 + $0x28] sm:$0xff]
    %v489 = vld [vmem:[%s1 + $0x30] sm:$0xff]
    %v490 = vld [vmem:[%s1 + $0x38] sm:$0xff]
    %v491 = vld [vmem:[%s1 + $0x40] sm:$0xff]
    %v492 = vld [vmem:[%s1 + $0x48] sm:$0xff]
    %v493 = vld [vmem:[%s1 + $0x50] sm:$0xff]
    %v494 = vld [vmem:[%s1 + $0x58] sm:$0xff]
    %v495 = vld [vmem:[%s1 + $0x60] sm:$0xff]
    %v496 = vld [vmem:[%s1 + $0x68] sm:$0xff]
    %v497 = vld [vmem:[%s1 + $0x70] sm:$0xff]
    %v498 = vld [vmem:[%s1 + $0x78] sm:$0xff]
    %v499 = vld [vmem:[%s1 + $0x80] sm:$0xff]
    %v500 = vld [vmem:[%s1 + $0x88] sm:$0xff]
    %v501 = vld [vmem:[%s1 + $0x90] sm:$0xff]
    %v502 = vld [vmem:[%s1 + $0x98] sm:$0xff]
    %v503 = vld [vmem:[%s1 + $0xa0] sm:$0xff]
    %v504 = vld [vmem:[%s1 + $0xa8] sm:$0xff]
    %v505 = vld [vmem:[%s1 + $0xb0] sm:$0xff]
    %v506 = vld [vmem:[%s1 + $0xb8] sm:$0xff]
    %v507 = vld [vmem:[%s1 + $0xc0] sm:$0xff]
    %v508 = vld [vmem:[%s1 + $0xc8] sm:$0xff]
    %v509 = vld [vmem:[%s1 + $0xd0] sm:$0xff]
    %v510 = vld [vmem:[%s1 + $0xd8] sm:$0xff]
    %v511 = vld [vmem:[%s1 + $0xe0] sm:$0xff]
    %v512 = vld [vmem:[%s1 + $0xe8] sm:$0xff]
    %v513 = vld [vmem:[%s1 + $0xf0] sm:$0xff]
    %v514 = vld [vmem:[%s1 + $0xf8] sm:$0xff]
    %v515 = vld [vmem:[%s1 + $0x100] sm:$0xff]
    %v516 = vld [vmem:[%s1 + $0x108] sm:$0xff]
    %v517 = vld [vmem:[%s1 + $0x110] sm:$0xff]
    %v518 = vld [vmem:[%s1 + $0x118] sm:$0xff]
    %v519 = vld [vmem:[%s1 + $0x120] sm:$0xff]
    %v520 = vld [vmem:[%s1 + $0x128] sm:$0xff]
    %v521 = vld [vmem:[%s1 + $0x130] sm:$0xff]
    %v522 = vld [vmem:[%s1 + $0x138] sm:$0xff]
    %v523 = vld [vmem:[%s1 + $0x140] sm:$0xff]
    %v524 = vld [vmem:[%s1 + $0x148] sm:$0xff]
    %v525 = vld [vmem:[%s1 + $0x150] sm:$0xff]
    %v526 = vld [vmem:[%s1 + $0x158] sm:$0xff]
    %v527 = vld [vmem:[%s1 + $0x160] sm:$0xff]
    %v528 = vld [vmem:[%s1 + $0x168] sm:$0xff]
    %v529 = vld [vmem:[%s1 + $0x170] sm:$0xff]
    %v530 = vld [vmem:[%s1 + $0x178] sm:$0xff]
    %v531 = vld [vmem:[%s1 + $0x180] sm:$0xff]
    %v532 = vld [vmem:[%s1 + $0x188] sm:$0xff]
    %v533 = vld [vmem:[%s1 + $0x190] sm:$0xff]
    %v534 = vld [vmem:[%s1 + $0x198] sm:$0xff]
    %v535 = vld [vmem:[%s1 + $0x1a0] sm:$0xff]
    %v536 = vld [vmem:[%s1 + $0x1a8] sm:$0xff]
    %v537 = vld [vmem:[%s1 + $0x1b0] sm:$0xff]
    %v538 = vld [vmem:[%s1 + $0x1b8] sm:$0xff]
    %v539 = vld [vmem:[%s1 + $0x1c0] sm:$0xff]
    %v540 = vld [vmem:[%s1 + $0x1c8] sm:$0xff]
    %v541 = vld [vmem:[%s1 + $0x1d0] sm:$0xff]
    %v542 = vld [vmem:[%s1 + $0x1d8] sm:$0xff]
    %v543 = vld [vmem:[%s1 + $0x1e0] sm:$0xff]
    %v544 = vld [vmem:[%s1 + $0x1e8] sm:$0xff]
    %v545 = vld [vmem:[%s1 + $0x1f0] sm:$0xff]
    %v546 = vld [vmem:[%s1 + $0x1f8] sm:$0xff]
    %547 = vmatprep.subr.mxu0 %v546
    %548 = vmatpush1.msra.mxu0 %v545
    %549 = vmatprep.subr.mxu0 %v544
    %550 = vmatpush1.msra.mxu0 %v543
    %551 = vmatprep.subr.mxu0 %v542
    %552 = vmatpush1.msra.mxu0 %v541
    %553 = vmatprep.subr.mxu0 %v540
    %554 = vmatpush1.msra.mxu0 %v539
    %555 = vmatprep.subr.mxu0 %v538
    %556 = vmatpush1.msra.mxu0 %v537
    %557 = vmatprep.subr.mxu0 %v536
    %558 = vmatpush1.msra.mxu0 %v535
    %559 = vmatprep.subr.mxu0 %v534
    %560 = vmatpush1.msra.mxu0 %v533
    %561 = vmatprep.subr.mxu0 %v532
    %562 = vmatpush1.msra.mxu0 %v531
    %563 = vmatprep.subr.mxu0 %v530
    %564 = vmatpush1.msra.mxu0 %v529
    %565 = vmatprep.subr.mxu0 %v528
    %566 = vmatpush1.msra.mxu0 %v527
    %567 = vmatprep.subr.mxu0 %v526
    %568 = vmatpush1.msra.mxu0 %v525
    %569 = vmatprep.subr.mxu0 %v524
    %570 = vmatpush1.msra.mxu0 %v523
    %571 = vmatprep.subr.mxu0 %v522
    %572 = vmatpush1.msra.mxu0 %v521
    %573 = vmatprep.subr.mxu0 %v520
    %574 = vmatpush1.msra.mxu0 %v519
    %575 = vmatprep.subr.mxu0 %v518
    %576 = vmatpush1.msra.mxu0 %v517
    %577 = vmatprep.subr.mxu0 %v516
    %578 = vmatpush1.msra.mxu0 %v515
    %579 = vmatprep.subr.mxu0 0.0
    %580 = vmatpush2.msra.mxu0 0.0
    %581 = vmatprep.subr.mxu0 0.0
    %582 = vmatpush2.msra.mxu0 0.0
    %583 = vmatprep.subr.mxu0 0.0
    %584 = vmatpush2.msra.mxu0 0.0
    %585 = vmatprep.subr.mxu0 0.0
    %586 = vmatpush2.msra.mxu0 0.0
    %587 = vmatprep.subr.mxu0 0.0
    %588 = vmatpush2.msra.mxu0 0.0
    %589 = vmatprep.subr.mxu0 0.0
    %590 = vmatpush2.msra.mxu0 0.0
    %591 = vmatprep.subr.mxu0 0.0
    %592 = vmatpush2.msra.mxu0 0.0
    %593 = vmatprep.subr.mxu0 0.0
    %594 = vmatpush2.msra.mxu0 0.0
    %595 = vmatprep.subr.mxu0 0.0
    %596 = vmatpush2.msra.mxu0 0.0
    %597 = vmatprep.subr.mxu0 0.0
    %598 = vmatpush2.msra.mxu0 0.0
    %599 = vmatprep.subr.mxu0 0.0
    %600 = vmatpush2.msra.mxu0 0.0
    %601 = vmatprep.subr.mxu0 0.0
    %602 = vmatpush2.msra.mxu0 0.0
    %603 = vmatprep.subr.mxu0 0.0
    %604 = vmatpush2.msra.mxu0 0.0
    %605 = vmatprep.subr.mxu0 0.0
    %606 = vmatpush2.msra.mxu0 0.0
    %607 = vmatprep.subr.mxu0 0.0
    %608 = vmatpush2.msra.mxu0 0.0
    %609 = vmatprep.subr.mxu0 0.0
    %610 = vmatpush2.msra.mxu0 0.0
    %611 = vmatprep.mubr.f32.mxu0 0.0
    %612 = vmatmul.mubr.f32.gmra.mxu0 %v475
    %v613 = vpop.f32.mrf.mxu0
    %v614 = vadd.f32 0.0, %v613
    %v615 = vpop.f32.mrf.mxu0
    %v616 = vadd.f32 0.0, %v615
    %617 = vmatprep.mubr.f32.mxu0 0.0
    %618 = vmatmul.mubr.f32.gmra.mxu0 %v476
    %v619 = vpop.f32.mrf.mxu0
    %v620 = vadd.f32 0.0, %v619
    %v621 = vpop.f32.mrf.mxu0
    %v622 = vadd.f32 0.0, %v621
    %623 = vdwg.mxu0
    %624 = vmatprep.subr.mxu0 %v514
    %625 = vmatpush1.msra.mxu0 %v513
    %626 = vmatprep.subr.mxu0 %v512
    %627 = vmatpush1.msra.mxu0 %v511
    %628 = vmatprep.subr.mxu0 %v510
    %629 = vmatpush1.msra.mxu0 %v509
    %630 = vmatprep.subr.mxu0 %v508
    %631 = vmatpush1.msra.mxu0 %v507
    %632 = vmatprep.subr.mxu0 %v506
    %633 = vmatpush1.msra.mxu0 %v505
    %634 = vmatprep.subr.mxu0 %v504
    %635 = vmatpush1.msra.mxu0 %v503
    %636 = vmatprep.subr.mxu0 %v502
    %637 = vmatpush1.msra.mxu0 %v501
    %638 = vmatprep.subr.mxu0 %v500
    %639 = vmatpush1.msra.mxu0 %v499
    %640 = vmatprep.subr.mxu0 %v498
    %641 = vmatpush1.msra.mxu0 %v497
    %642 = vmatprep.subr.mxu0 %v496
    %643 = vmatpush1.msra.mxu0 %v495
    %644 = vmatprep.subr.mxu0 %v494
    %645 = vmatpush1.msra.mxu0 %v493
    %646 = vmatprep.subr.mxu0 %v492
    %647 = vmatpush1.msra.mxu0 %v491
    %648 = vmatprep.subr.mxu0 %v490
    %649 = vmatpush1.msra.mxu0 %v489
    %650 = vmatprep.subr.mxu0 %v488
    %651 = vmatpush1.msra.mxu0 %v487
    %652 = vmatprep.subr.mxu0 %v486
    %653 = vmatpush1.msra.mxu0 %v485
    %654 = vmatprep.subr.mxu0 %v484
    %655 = vmatpush1.msra.mxu0 %v483
    %656 = vmatprep.subr.mxu0 0.0
    %657 = vmatpush2.msra.mxu0 0.0
    %658 = vmatprep.subr.mxu0 0.0
    %659 = vmatpush2.msra.mxu0 0.0
    %660 = vmatprep.subr.mxu0 0.0
    %661 = vmatpush2.msra.mxu0 0.0
    %662 = vmatprep.subr.mxu0 0.0
    %663 = vmatpush2.msra.mxu0 0.0
    %664 = vmatprep.subr.mxu0 0.0
    %665 = vmatpush2.msra.mxu0 0.0
    %666 = vmatprep.subr.mxu0 0.0
    %667 = vmatpush2.msra.mxu0 0.0
    %668 = vmatprep.subr.mxu0 0.0
    %669 = vmatpush2.msra.mxu0 0.0
    %670 = vmatprep.subr.mxu0 0.0
    %671 = vmatpush2.msra.mxu0 0.0
    %672 = vmatprep.subr.mxu0 0.0
    %673 = vmatpush2.msra.mxu0 0.0
    %674 = vmatprep.subr.mxu0 0.0
    %675 = vmatpush2.msra.mxu0 0.0
    %676 = vmatprep.subr.mxu0 0.0
    %677 = vmatpush2.msra.mxu0 0.0
    %678 = vmatprep.subr.mxu0 0.0
    %679 = vmatpush2.msra.mxu0 0.0
    %680 = vmatprep.subr.mxu0 0.0
    %681 = vmatpush2.msra.mxu0 0.0
    %682 = vmatprep.subr.mxu0 0.0
    %683 = vmatpush2.msra.mxu0 0.0
    %684 = vmatprep.subr.mxu0 0.0
    %685 = vmatpush2.msra.mxu0 0.0
    %686 = vmatprep.subr.mxu0 0.0
    %687 = vmatpush2.msra.mxu0 0.0
    %688 = vmatprep.mubr.f32.mxu0 0.0
    %689 = vmatmul.mubr.f32.gmra.mxu0 %v473
    %v690 = vpop.f32.mrf.mxu0
    %v691 = vadd.f32 %v614, %v690
    %v692 = vpop.f32.mrf.mxu0
    %v693 = vadd.f32 %v616, %v692
    %694 = vmatprep.mubr.f32.mxu0 0.0
    %695 = vmatmul.mubr.f32.gmra.mxu0 %v474
    %v696 = vpop.f32.mrf.mxu0
    %v697 = vadd.f32 %v620, %v696
    %v698 = vpop.f32.mrf.mxu0
    %v699 = vadd.f32 %v622, %v698
    %700 = vdwg.mxu0
    %v701 = vld [vmem:[%s1 + $0x200] sm:$0xff]
    %v702 = vld [vmem:[%s1 + $0x208] sm:$0xff]
    %v703 = vld [vmem:[%s1 + $0x210] sm:$0xff]
    %v704 = vld [vmem:[%s1 + $0x218] sm:$0xff]
    %v705 = vld [vmem:[%s1 + $0x220] sm:$0xff]
    %v706 = vld [vmem:[%s1 + $0x228] sm:$0xff]
    %v707 = vld [vmem:[%s1 + $0x230] sm:$0xff]
    %v708 = vld [vmem:[%s1 + $0x238] sm:$0xff]
    %v709 = vld [vmem:[%s1 + $0x240] sm:$0xff]
    %v710 = vld [vmem:[%s1 + $0x248] sm:$0xff]
    %v711 = vld [vmem:[%s1 + $0x250] sm:$0xff]
    %v712 = vld [vmem:[%s1 + $0x258] sm:$0xff]
    %v713 = vld [vmem:[%s1 + $0x260] sm:$0xff]
    %v714 = vld [vmem:[%s1 + $0x268] sm:$0xff]
    %v715 = vld [vmem:[%s1 + $0x270] sm:$0xff]
    %v716 = vld [vmem:[%s1 + $0x278] sm:$0xff]
    %v717 = vld [vmem:[%s1 + $0x280] sm:$0xff]
    %v718 = vld [vmem:[%s1 + $0x288] sm:$0xff]
    %v719 = vld [vmem:[%s1 + $0x290] sm:$0xff]
    %v720 = vld [vmem:[%s1 + $0x298] sm:$0xff]
    %v721 = vld [vmem:[%s1 + $0x2a0] sm:$0xff]
    %v722 = vld [vmem:[%s1 + $0x2a8] sm:$0xff]
    %v723 = vld [vmem:[%s1 + $0x2b0] sm:$0xff]
    %v724 = vld [vmem:[%s1 + $0x2b8] sm:$0xff]
    %v725 = vld [vmem:[%s1 + $0x2c0] sm:$0xff]
    %v726 = vld [vmem:[%s1 + $0x2c8] sm:$0xff]
    %v727 = vld [vmem:[%s1 + $0x2d0] sm:$0xff]
    %v728 = vld [vmem:[%s1 + $0x2d8] sm:$0xff]
    %v729 = vld [vmem:[%s1 + $0x2e0] sm:$0xff]
    %v730 = vld [vmem:[%s1 + $0x2e8] sm:$0xff]
    %v731 = vld [vmem:[%s1 + $0x2f0] sm:$0xff]
    %v732 = vld [vmem:[%s1 + $0x2f8] sm:$0xff]
    %733 = vmatprep.subr.mxu0 %v732
    %734 = vmatpush1.msra.mxu0 %v731
    %735 = vmatprep.subr.mxu0 %v730
    %736 = vmatpush1.msra.mxu0 %v729
    %737 = vmatprep.subr.mxu0 %v728
    %738 = vmatpush1.msra.mxu0 %v727
    %739 = vmatprep.subr.mxu0 %v726
    %740 = vmatpush1.msra.mxu0 %v725
    %741 = vmatprep.subr.mxu0 %v724
    %742 = vmatpush1.msra.mxu0 %v723
    %743 = vmatprep.subr.mxu0 %v722
    %744 = vmatpush1.msra.mxu0 %v721
    %745 = vmatprep.subr.mxu0 %v720
    %746 = vmatpush1.msra.mxu0 %v719
    %747 = vmatprep.subr.mxu0 %v718
    %748 = vmatpush1.msra.mxu0 %v717
    %749 = vmatprep.subr.mxu0 %v716
    %750 = vmatpush1.msra.mxu0 %v715
    %751 = vmatprep.subr.mxu0 %v714
    %752 = vmatpush1.msra.mxu0 %v713
    %753 = vmatprep.subr.mxu0 %v712
    %754 = vmatpush1.msra.mxu0 %v711
    %755 = vmatprep.subr.mxu0 %v710
    %756 = vmatpush1.msra.mxu0 %v709
    %757 = vmatprep.subr.mxu0 %v708
    %758 = vmatpush1.msra.mxu0 %v707
    %759 = vmatprep.subr.mxu0 %v706
    %760 = vmatpush1.msra.mxu0 %v705
    %761 = vmatprep.subr.mxu0 %v704
    %762 = vmatpush1.msra.mxu0 %v703
    %763 = vmatprep.subr.mxu0 %v702
    %764 = vmatpush1.msra.mxu0 %v701
    %765 = vmatprep.subr.mxu0 0.0
    %766 = vmatpush2.msra.mxu0 0.0
    %767 = vmatprep.subr.mxu0 0.0
    %768 = vmatpush2.msra.mxu0 0.0
    %769 = vmatprep.subr.mxu0 0.0
    %770 = vmatpush2.msra.mxu0 0.0
    %771 = vmatprep.subr.mxu0 0.0
    %772 = vmatpush2.msra.mxu0 0.0
    %773 = vmatprep.subr.mxu0 0.0
    %774 = vmatpush2.msra.mxu0 0.0
    %775 = vmatprep.subr.mxu0 0.0
    %776 = vmatpush2.msra.mxu0 0.0
    %777 = vmatprep.subr.mxu0 0.0
    %778 = vmatpush2.msra.mxu0 0.0
    %779 = vmatprep.subr.mxu0 0.0
    %780 = vmatpush2.msra.mxu0 0.0
    %781 = vmatprep.subr.mxu0 0.0
    %782 = vmatpush2.msra.mxu0 0.0
    %783 = vmatprep.subr.mxu0 0.0
    %784 = vmatpush2.msra.mxu0 0.0
    %785 = vmatprep.subr.mxu0 0.0
    %786 = vmatpush2.msra.mxu0 0.0
    %787 = vmatprep.subr.mxu0 0.0
    %788 = vmatpush2.msra.mxu0 0.0
    %789 = vmatprep.subr.mxu0 0.0
    %790 = vmatpush2.msra.mxu0 0.0
    %791 = vmatprep.subr.mxu0 0.0
    %792 = vmatpush2.msra.mxu0 0.0
    %793 = vmatprep.subr.mxu0 0.0
    %794 = vmatpush2.msra.mxu0 0.0
    %795 = vmatprep.subr.mxu0 0.0
    %796 = vmatpush2.msra.mxu0 0.0
    %797 = vmatprep.mubr.f32.mxu0 0.0
    %798 = vmatmul.mubr.f32.gmra.mxu0 %v477
    %v799 = vpop.f32.mrf.mxu0
    %v800 = vadd.f32 0.0, %v799
    %v801 = vpop.f32.mrf.mxu0
    %v802 = vadd.f32 0.0, %v801
    %803 = vmatprep.mubr.f32.mxu0 0.0
    %804 = vmatmul.mubr.f32.gmra.mxu0 %v478
    %v805 = vpop.f32.mrf.mxu0
    %v806 = vadd.f32 0.0, %v805
    %v807 = vpop.f32.mrf.mxu0
    %v808 = vadd.f32 0.0, %v807
    %809 = vdwg.mxu0
    %v810 = vadd.f32 %v691, %v800
    %v811 = vadd.f32 %v693, %v802
    %v812 = vadd.f32 %v697, %v806
    %v813 = vadd.f32 %v699, %v808
    %v814 = vld [vmem:[%s1 + $0x300] sm:$0xff]
    %v815 = vld [vmem:[%s1 + $0x308] sm:$0xff]
    %v816 = vld [vmem:[%s1 + $0x310] sm:$0xff]
    %v817 = vld [vmem:[%s1 + $0x318] sm:$0xff]
    %v818 = vld [vmem:[%s1 + $0x320] sm:$0xff]
    %v819 = vld [vmem:[%s1 + $0x328] sm:$0xff]
    %v820 = vld [vmem:[%s1 + $0x330] sm:$0xff]
    %v821 = vld [vmem:[%s1 + $0x338] sm:$0xff]
    %v822 = vld [vmem:[%s1 + $0x340] sm:$0xff]
    %v823 = vld [vmem:[%s1 + $0x348] sm:$0xff]
    %v824 = vld [vmem:[%s1 + $0x350] sm:$0xff]
    %v825 = vld [vmem:[%s1 + $0x358] sm:$0xff]
    %v826 = vld [vmem:[%s1 + $0x360] sm:$0xff]
    %v827 = vld [vmem:[%s1 + $0x368] sm:$0xff]
    %v828 = vld [vmem:[%s1 + $0x370] sm:$0xff]
    %v829 = vld [vmem:[%s1 + $0x378] sm:$0xff]
    %v830 = vld [vmem:[%s1 + $0x380] sm:$0xff]
    %v831 = vld [vmem:[%s1 + $0x388] sm:$0xff]
    %v832 = vld [vmem:[%s1 + $0x390] sm:$0xff]
    %v833 = vld [vmem:[%s1 + $0x398] sm:$0xff]
    %v834 = vld [vmem:[%s1 + $0x3a0] sm:$0xff]
    %v835 = vld [vmem:[%s1 + $0x3a8] sm:$0xff]
    %v836 = vld [vmem:[%s1 + $0x3b0] sm:$0xff]
    %v837 = vld [vmem:[%s1 + $0x3b8] sm:$0xff]
    %v838 = vld [vmem:[%s1 + $0x3c0] sm:$0xff]
    %v839 = vld [vmem:[%s1 + $0x3c8] sm:$0xff]
    %v840 = vld [vmem:[%s1 + $0x3d0] sm:$0xff]
    %v841 = vld [vmem:[%s1 + $0x3d8] sm:$0xff]
    %v842 = vld [vmem:[%s1 + $0x3e0] sm:$0xff]
    %v843 = vld [vmem:[%s1 + $0x3e8] sm:$0xff]
    %v844 = vld [vmem:[%s1 + $0x3f0] sm:$0xff]
    %v845 = vld [vmem:[%s1 + $0x3f8] sm:$0xff]
    %846 = vmatprep.subr.mxu0 %v845
    %847 = vmatpush1.msra.mxu0 %v844
    %848 = vmatprep.subr.mxu0 %v843
    %849 = vmatpush1.msra.mxu0 %v842
    %850 = vmatprep.subr.mxu0 %v841
    %851 = vmatpush1.msra.mxu0 %v840
    %852 = vmatprep.subr.mxu0 %v839
    %853 = vmatpush1.msra.mxu0 %v838
    %854 = vmatprep.subr.mxu0 %v837
    %855 = vmatpush1.msra.mxu0 %v836
    %856 = vmatprep.subr.mxu0 %v835
    %857 = vmatpush1.msra.mxu0 %v834
    %858 = vmatprep.subr.mxu0 %v833
    %859 = vmatpush1.msra.mxu0 %v832
    %860 = vmatprep.subr.mxu0 %v831
    %861 = vmatpush1.msra.mxu0 %v830
    %862 = vmatprep.subr.mxu0 %v829
    %863 = vmatpush1.msra.mxu0 %v828
    %864 = vmatprep.subr.mxu0 %v827
    %865 = vmatpush1.msra.mxu0 %v826
    %866 = vmatprep.subr.mxu0 %v825
    %867 = vmatpush1.msra.mxu0 %v824
    %868 = vmatprep.subr.mxu0 %v823
    %869 = vmatpush1.msra.mxu0 %v822
    %870 = vmatprep.subr.mxu0 %v821
    %871 = vmatpush1.msra.mxu0 %v820
    %872 = vmatprep.subr.mxu0 %v819
    %873 = vmatpush1.msra.mxu0 %v818
    %874 = vmatprep.subr.mxu0 %v817
    %875 = vmatpush1.msra.mxu0 %v816
    %876 = vmatprep.subr.mxu0 %v815
    %877 = vmatpush1.msra.mxu0 %v814
    %878 = vmatprep.subr.mxu0 0.0
    %879 = vmatpush2.msra.mxu0 0.0
    %880 = vmatprep.subr.mxu0 0.0
    %881 = vmatpush2.msra.mxu0 0.0
    %882 = vmatprep.subr.mxu0 0.0
    %883 = vmatpush2.msra.mxu0 0.0
    %884 = vmatprep.subr.mxu0 0.0
    %885 = vmatpush2.msra.mxu0 0.0
    %886 = vmatprep.subr.mxu0 0.0
    %887 = vmatpush2.msra.mxu0 0.0
    %888 = vmatprep.subr.mxu0 0.0
    %889 = vmatpush2.msra.mxu0 0.0
    %890 = vmatprep.subr.mxu0 0.0
    %891 = vmatpush2.msra.mxu0 0.0
    %892 = vmatprep.subr.mxu0 0.0
    %893 = vmatpush2.msra.mxu0 0.0
    %894 = vmatprep.subr.mxu0 0.0
    %895 = vmatpush2.msra.mxu0 0.0
    %896 = vmatprep.subr.mxu0 0.0
    %897 = vmatpush2.msra.mxu0 0.0
    %898 = vmatprep.subr.mxu0 0.0
    %899 = vmatpush2.msra.mxu0 0.0
    %900 = vmatprep.subr.mxu0 0.0
    %901 = vmatpush2.msra.mxu0 0.0
    %902 = vmatprep.subr.mxu0 0.0
    %903 = vmatpush2.msra.mxu0 0.0
    %904 = vmatprep.subr.mxu0 0.0
    %905 = vmatpush2.msra.mxu0 0.0
    %906 = vmatprep.subr.mxu0 0.0
    %907 = vmatpush2.msra.mxu0 0.0
    %908 = vmatprep.subr.mxu0 0.0
    %909 = vmatpush2.msra.mxu0 0.0
    %910 = vmatprep.mubr.f32.mxu0 0.0
    %911 = vmatmul.mubr.f32.gmra.mxu0 %v479
    %v912 = vpop.f32.mrf.mxu0
    %v913 = vadd.f32 0.0, %v912
    %v914 = vpop.f32.mrf.mxu0
    %v915 = vadd.f32 0.0, %v914
    %916 = vmatprep.mubr.f32.mxu0 0.0
    %917 = vmatmul.mubr.f32.gmra.mxu0 %v480
    %v918 = vpop.f32.mrf.mxu0
    %v919 = vadd.f32 0.0, %v918
    %v920 = vpop.f32.mrf.mxu0
    %v921 = vadd.f32 0.0, %v920
    %922 = vdwg.mxu0
    %v923 = vadd.f32 %v810, %v913
    %v924 = vadd.f32 %v811, %v915
    %v925 = vadd.f32 %v812, %v919
    %v926 = vadd.f32 %v813, %v921
    %v927 = vld [vmem:[%s1 + $0x400] sm:$0xff]
    %v928 = vld [vmem:[%s1 + $0x408] sm:$0xff]
    %v929 = vld [vmem:[%s1 + $0x410] sm:$0xff]
    %v930 = vld [vmem:[%s1 + $0x418] sm:$0xff]
    %v931 = vld [vmem:[%s1 + $0x420] sm:$0xff]
    %v932 = vld [vmem:[%s1 + $0x428] sm:$0xff]
    %v933 = vld [vmem:[%s1 + $0x430] sm:$0xff]
    %v934 = vld [vmem:[%s1 + $0x438] sm:$0xff]
    %v935 = vld [vmem:[%s1 + $0x440] sm:$0xff]
    %v936 = vld [vmem:[%s1 + $0x448] sm:$0xff]
    %v937 = vld [vmem:[%s1 + $0x450] sm:$0xff]
    %v938 = vld [vmem:[%s1 + $0x458] sm:$0xff]
    %v939 = vld [vmem:[%s1 + $0x460] sm:$0xff]
    %v940 = vld [vmem:[%s1 + $0x468] sm:$0xff]
    %v941 = vld [vmem:[%s1 + $0x470] sm:$0xff]
    %v942 = vld [vmem:[%s1 + $0x478] sm:$0xff]
    %v943 = vld [vmem:[%s1 + $0x480] sm:$0xff]
    %v944 = vld [vmem:[%s1 + $0x488] sm:$0xff]
    %v945 = vld [vmem:[%s1 + $0x490] sm:$0xff]
    %v946 = vld [vmem:[%s1 + $0x498] sm:$0xff]
    %v947 = vld [vmem:[%s1 + $0x4a0] sm:$0xff]
    %v948 = vld [vmem:[%s1 + $0x4a8] sm:$0xff]
    %v949 = vld [vmem:[%s1 + $0x4b0] sm:$0xff]
    %v950 = vld [vmem:[%s1 + $0x4b8] sm:$0xff]
    %v951 = vld [vmem:[%s1 + $0x4c0] sm:$0xff]
    %v952 = vld [vmem:[%s1 + $0x4c8] sm:$0xff]
    %v953 = vld [vmem:[%s1 + $0x4d0] sm:$0xff]
    %v954 = vld [vmem:[%s1 + $0x4d8] sm:$0xff]
    %v955 = vld [vmem:[%s1 + $0x4e0] sm:$0xff]
    %v956 = vld [vmem:[%s1 + $0x4e8] sm:$0xff]
    %v957 = vld [vmem:[%s1 + $0x4f0] sm:$0xff]
    %v958 = vld [vmem:[%s1 + $0x4f8] sm:$0xff]
    %959 = vmatprep.subr.mxu0 %v958
    %960 = vmatpush1.msra.mxu0 %v957
    %961 = vmatprep.subr.mxu0 %v956
    %962 = vmatpush1.msra.mxu0 %v955
    %963 = vmatprep.subr.mxu0 %v954
    %964 = vmatpush1.msra.mxu0 %v953
    %965 = vmatprep.subr.mxu0 %v952
    %966 = vmatpush1.msra.mxu0 %v951
    %967 = vmatprep.subr.mxu0 %v950
    %968 = vmatpush1.msra.mxu0 %v949
    %969 = vmatprep.subr.mxu0 %v948
    %970 = vmatpush1.msra.mxu0 %v947
    %971 = vmatprep.subr.mxu0 %v946
    %972 = vmatpush1.msra.mxu0 %v945
    %973 = vmatprep.subr.mxu0 %v944
    %974 = vmatpush1.msra.mxu0 %v943
    %975 = vmatprep.subr.mxu0 %v942
    %976 = vmatpush1.msra.mxu0 %v941
    %977 = vmatprep.subr.mxu0 %v940
    %978 = vmatpush1.msra.mxu0 %v939
    %979 = vmatprep.subr.mxu0 %v938
    %980 = vmatpush1.msra.mxu0 %v937
    %981 = vmatprep.subr.mxu0 %v936
    %982 = vmatpush1.msra.mxu0 %v935
    %983 = vmatprep.subr.mxu0 %v934
    %984 = vmatpush1.msra.mxu0 %v933
    %985 = vmatprep.subr.mxu0 %v932
    %986 = vmatpush1.msra.mxu0 %v931
    %987 = vmatprep.subr.mxu0 %v930
    %988 = vmatpush1.msra.mxu0 %v929
    %989 = vmatprep.subr.mxu0 %v928
    %990 = vmatpush1.msra.mxu0 %v927
    %991 = vmatprep.subr.mxu0 0.0
    %992 = vmatpush2.msra.mxu0 0.0
    %993 = vmatprep.subr.mxu0 0.0
    %994 = vmatpush2.msra.mxu0 0.0
    %995 = vmatprep.subr.mxu0 0.0
    %996 = vmatpush2.msra.mxu0 0.0
    %997 = vmatprep.subr.mxu0 0.0
    %998 = vmatpush2.msra.mxu0 0.0
    %999 = vmatprep.subr.mxu0 0.0
    %1000 = vmatpush2.msra.mxu0 0.0
    %1001 = vmatprep.subr.mxu0 0.0
    %1002 = vmatpush2.msra.mxu0 0.0
    %1003 = vmatprep.subr.mxu0 0.0
    %1004 = vmatpush2.msra.mxu0 0.0
    %1005 = vmatprep.subr.mxu0 0.0
    %1006 = vmatpush2.msra.mxu0 0.0
    %1007 = vmatprep.subr.mxu0 0.0
    %1008 = vmatpush2.msra.mxu0 0.0
    %1009 = vmatprep.subr.mxu0 0.0
    %1010 = vmatpush2.msra.mxu0 0.0
    %1011 = vmatprep.subr.mxu0 0.0
    %1012 = vmatpush2.msra.mxu0 0.0
    %1013 = vmatprep.subr.mxu0 0.0
    %1014 = vmatpush2.msra.mxu0 0.0
    %1015 = vmatprep.subr.mxu0 0.0
    %1016 = vmatpush2.msra.mxu0 0.0
    %1017 = vmatprep.subr.mxu0 0.0
    %1018 = vmatpush2.msra.mxu0 0.0
    %1019 = vmatprep.subr.mxu0 0.0
    %1020 = vmatpush2.msra.mxu0 0.0
    %1021 = vmatprep.subr.mxu0 0.0
    %1022 = vmatpush2.msra.mxu0 0.0
    %1023 = vmatprep.mubr.f32.mxu0 0.0
    %1024 = vmatmul.mubr.f32.gmra.mxu0 %v481
    %v1025 = vpop.f32.mrf.mxu0
    %v1026 = vadd.f32 0.0, %v1025
    %v1027 = vpop.f32.mrf.mxu0
    %v1028 = vadd.f32 0.0, %v1027
    %1029 = vmatprep.mubr.f32.mxu0 0.0
    %1030 = vmatmul.mubr.f32.gmra.mxu0 %v482
    %v1031 = vpop.f32.mrf.mxu0
    %v1032 = vadd.f32 0.0, %v1031
    %v1033 = vpop.f32.mrf.mxu0
    %v1034 = vadd.f32 0.0, %v1033
    %1035 = vdwg.mxu0
    %v1036 = vadd.f32 %v923, %v1026
    %v1037 = vadd.f32 %v924, %v1028
    %v1038 = vadd.f32 %v925, %v1032
    %v1039 = vadd.f32 %v926, %v1034
    %v1040 = vmax.f32 %v1036, %v1037
    %v1041 = vmax.f32 %v1038, %v1039
    %v1042 = vld [vmem:[%s2 + $0xa0] sm:$0xff]
    %v1043 = vld [vmem:[%s2 + $0xa8] sm:$0xff]
    %v1044 = vld [vmem:[%s2 + $0xb0] sm:$0xff]
    %v1045 = vld [vmem:[%s2 + $0xb8] sm:$0xff]
    %v1046 = vld [vmem:[%s2 + $0xc0] sm:$0xff]
    %v1047 = vld [vmem:[%s2 + $0xc8] sm:$0xff]
    %v1048 = vld [vmem:[%s2 + $0xd0] sm:$0xff]
    %v1049 = vld [vmem:[%s2 + $0xd8] sm:$0xff]
    %vm1050 = vcmask 130048
    %v1052 = vsel %vm1050, %v1042, 0
    %v1055 = vsel %vm1050, %v1043, 0
    %v1058 = vsel %vm1050, %v1044, 0
    %v1061 = vsel %vm1050, %v1045, 0
    %v1064 = vsel %vm1050, %v1046, 0
    %v1067 = vsel %vm1050, %v1047, 0
    %v1070 = vsel %vm1050, %v1048, 0
    %v1073 = vsel %vm1050, %v1049, 0
    %1075 = vmatprep.subr.mxu0 0.0
    %1076 = vmatpush1.msra.mxu0 0.0
    %1077 = vmatprep.subr.mxu0 0.0
    %1078 = vmatpush1.msra.mxu0 0.0
    %1079 = vmatprep.subr.mxu0 0.0
    %1080 = vmatpush1.msra.mxu0 0.0
    %1081 = vmatprep.subr.mxu0 0.0
    %1082 = vmatpush1.msra.mxu0 0.0
    %1083 = vmatprep.subr.mxu0 0.0
    %1084 = vmatpush1.msra.mxu0 0.0
    %1085 = vmatprep.subr.mxu0 0.0
    %1086 = vmatpush1.msra.mxu0 0.0
    %1087 = vmatprep.subr.mxu0 0.0
    %1088 = vmatpush1.msra.mxu0 0.0
    %1089 = vmatprep.subr.mxu0 0.0
    %1090 = vmatpush1.msra.mxu0 0.0
    %1091 = vmatprep.subr.mxu0 0.0
    %1092 = vmatpush1.msra.mxu0 0.0
    %1093 = vmatprep.subr.mxu0 0.0
    %1094 = vmatpush1.msra.mxu0 0.0
    %1095 = vmatprep.subr.mxu0 0.0
    %1096 = vmatpush1.msra.mxu0 0.0
    %1097 = vmatprep.subr.mxu0 0.0
    %1098 = vmatpush1.msra.mxu0 0.0
    %1099 = vmatprep.subr.mxu0 0.0
    %1100 = vmatpush1.msra.mxu0 0.0
    %1101 = vmatprep.subr.mxu0 0.0
    %1102 = vmatpush1.msra.mxu0 0.0
    %1103 = vmatprep.subr.mxu0 0.0
    %1104 = vmatpush1.msra.mxu0 %v1041
    %1105 = vmatprep.subr.mxu0 0.0
    %1106 = vmatpush1.msra.mxu0 %v1040
    %1107 = vmatprep.subr.mxu0 0.0
    %1108 = vmatpush2.msra.mxu0 0.0
    %1109 = vmatprep.subr.mxu0 0.0
    %1110 = vmatpush2.msra.mxu0 0.0
    %1111 = vmatprep.subr.mxu0 0.0
    %1112 = vmatpush2.msra.mxu0 0.0
    %1113 = vmatprep.subr.mxu0 0.0
    %1114 = vmatpush2.msra.mxu0 0.0
    %1115 = vmatprep.subr.mxu0 0.0
    %1116 = vmatpush2.msra.mxu0 0.0
    %1117 = vmatprep.subr.mxu0 0.0
    %1118 = vmatpush2.msra.mxu0 0.0
    %1119 = vmatprep.subr.mxu0 0.0
    %1120 = vmatpush2.msra.mxu0 0.0
    %1121 = vmatprep.subr.mxu0 0.0
    %1122 = vmatpush2.msra.mxu0 0.0
    %1123 = vmatprep.subr.mxu0 0.0
    %1124 = vmatpush2.msra.mxu0 0.0
    %1125 = vmatprep.subr.mxu0 0.0
    %1126 = vmatpush2.msra.mxu0 0.0
    %1127 = vmatprep.subr.mxu0 0.0
    %1128 = vmatpush2.msra.mxu0 0.0
    %1129 = vmatprep.subr.mxu0 0.0
    %1130 = vmatpush2.msra.mxu0 0.0
    %1131 = vmatprep.subr.mxu0 0.0
    %1132 = vmatpush2.msra.mxu0 0.0
    %1133 = vmatprep.subr.mxu0 0.0
    %1134 = vmatpush2.msra.mxu0 0.0
    %1135 = vmatprep.subr.mxu0 0.0
    %1136 = vmatpush2.msra.mxu0 0.0
    %1137 = vmatprep.subr.mxu0 0.0
    %1138 = vmatpush2.msra.mxu0 0.0
    %1139 = vmatprep.mubr.f32.mxu0 0.0
    %1140 = vmatmul.mubr.f32.gmra.mxu0 %v1052
    %v1141 = vpop.f32.mrf.mxu0
    %v1142 = vadd.f32 0.0, %v1141
    %v1143 = vpop.f32.mrf.mxu0
    %1144 = vmatprep.mubr.f32.mxu0 0.0
    %1145 = vmatmul.mubr.f32.gmra.mxu0 %v1055
    %v1146 = vpop.f32.mrf.mxu0
    %v1147 = vadd.f32 0.0, %v1146
    %v1148 = vpop.f32.mrf.mxu0
    %1149 = vmatprep.mubr.f32.mxu0 0.0
    %1150 = vmatmul.mubr.f32.gmra.mxu0 %v1058
    %v1151 = vpop.f32.mrf.mxu0
    %v1152 = vadd.f32 0.0, %v1151
    %v1153 = vpop.f32.mrf.mxu0
    %1154 = vmatprep.mubr.f32.mxu0 0.0
    %1155 = vmatmul.mubr.f32.gmra.mxu0 %v1061
    %v1156 = vpop.f32.mrf.mxu0
    %v1157 = vadd.f32 0.0, %v1156
    %v1158 = vpop.f32.mrf.mxu0
    %1159 = vmatprep.mubr.f32.mxu0 0.0
    %1160 = vmatmul.mubr.f32.gmra.mxu0 %v1064
    %v1161 = vpop.f32.mrf.mxu0
    %v1162 = vadd.f32 0.0, %v1161
    %v1163 = vpop.f32.mrf.mxu0
    %1164 = vmatprep.mubr.f32.mxu0 0.0
    %1165 = vmatmul.mubr.f32.gmra.mxu0 %v1067
    %v1166 = vpop.f32.mrf.mxu0
    %v1167 = vadd.f32 0.0, %v1166
    %v1168 = vpop.f32.mrf.mxu0
    %1169 = vmatprep.mubr.f32.mxu0 0.0
    %1170 = vmatmul.mubr.f32.gmra.mxu0 %v1070
    %v1171 = vpop.f32.mrf.mxu0
    %v1172 = vadd.f32 0.0, %v1171
    %v1173 = vpop.f32.mrf.mxu0
    %1174 = vmatprep.mubr.f32.mxu0 0.0
    %1175 = vmatmul.mubr.f32.gmra.mxu0 %v1073
    %v1176 = vpop.f32.mrf.mxu0
    %v1177 = vadd.f32 0.0, %v1176
    %v1178 = vpop.f32.mrf.mxu0
    %1179 = vdwg.mxu0
    %v1180 = vmax.f32 %v1142, %v1162
    %v1181 = vmax.f32 %v1147, %v1167
    %v1182 = vmax.f32 %v1152, %v1172
    %v1183 = vmax.f32 %v1157, %v1177
    %v1184 = vld [vmem:[%s3 + $0x1] sm:$0x1]
    %v1185 = vlaneseq
    %v1186 = vshrl.u32 %v1185, 7
    %v1187 = vsub.s32 0, %v1186
    %v1188 = vrot.slane %v1184, %v1187
    %v1189 = vadd.f32 %v1180, %v1188
    %v1190 = vadd.f32 %v1181, %v1188
    %v1191 = vadd.f32 %v1182, %v1188
    %v1192 = vadd.f32 %v1183, %v1188
    %v1193 = vmax.f32 %v1189, 0.0
    %v1194 = vmax.f32 %v1190, 0.0
    %v1195 = vmax.f32 %v1191, 0.0
    %v1196 = vmax.f32 %v1192, 0.0
    %v1197 = vld [vmem:[%s4] sm:$0xff]
    %v1198 = vld [vmem:[%s4 + $0x8] sm:$0xff]
    %v1199 = vld [vmem:[%s4 + $0x10] sm:$0xff]
    %v1200 = vld [vmem:[%s4 + $0x18] sm:$0xff]
    %v1201 = vld [vmem:[%s4 + $0x20] sm:$0xff]
    %v1202 = vld [vmem:[%s4 + $0x28] sm:$0xff]
    %v1203 = vld [vmem:[%s4 + $0x30] sm:$0xff]
    %v1204 = vld [vmem:[%s4 + $0x38] sm:$0xff]
    %v1205 = vld [vmem:[%s4 + $0x40] sm:$0xff]
    %v1206 = vld [vmem:[%s4 + $0x48] sm:$0xff]
    %v1207 = vld [vmem:[%s4 + $0x50] sm:$0xff]
    %v1208 = vld [vmem:[%s4 + $0x58] sm:$0xff]
    %v1209 = vld [vmem:[%s4 + $0x60] sm:$0xff]
    %v1210 = vld [vmem:[%s4 + $0x68] sm:$0xff]
    %v1211 = vld [vmem:[%s4 + $0x70] sm:$0xff]
    %v1212 = vld [vmem:[%s4 + $0x78] sm:$0xff]
    %v1213 = vld [vmem:[%s4 + $0x80] sm:$0xff]
    %v1214 = vld [vmem:[%s4 + $0x88] sm:$0xff]
    %v1215 = vld [vmem:[%s4 + $0x90] sm:$0xff]
    %v1216 = vld [vmem:[%s4 + $0x98] sm:$0xff]
    %v1217 = vld [vmem:[%s4 + $0xa0] sm:$0xff]
    %v1218 = vld [vmem:[%s4 + $0xa8] sm:$0xff]
    %v1219 = vld [vmem:[%s4 + $0xb0] sm:$0xff]
    %v1220 = vld [vmem:[%s4 + $0xb8] sm:$0xff]
    %v1221 = vld [vmem:[%s4 + $0xc0] sm:$0xff]
    %v1222 = vld [vmem:[%s4 + $0xc8] sm:$0xff]
    %v1223 = vld [vmem:[%s4 + $0xd0] sm:$0xff]
    %v1224 = vld [vmem:[%s4 + $0xd8] sm:$0xff]
    %v1225 = vld [vmem:[%s4 + $0xe0] sm:$0xff]
    %v1226 = vld [vmem:[%s4 + $0xe8] sm:$0xff]
    %v1227 = vld [vmem:[%s4 + $0xf0] sm:$0xff]
    %v1228 = vld [vmem:[%s4 + $0xf8] sm:$0xff]
    %v1229 = vld [vmem:[%s4 + $0x100] sm:$0xff]
    %v1230 = vld [vmem:[%s4 + $0x108] sm:$0xff]
    %v1231 = vld [vmem:[%s4 + $0x110] sm:$0xff]
    %v1232 = vld [vmem:[%s4 + $0x118] sm:$0xff]
    %v1233 = vld [vmem:[%s4 + $0x120] sm:$0xff]
    %v1234 = vld [vmem:[%s4 + $0x128] sm:$0xff]
    %v1235 = vld [vmem:[%s4 + $0x130] sm:$0xff]
    %v1236 = vld [vmem:[%s4 + $0x138] sm:$0xff]
    %v1237 = vld [vmem:[%s4 + $0x140] sm:$0xff]
    %v1238 = vld [vmem:[%s4 + $0x148] sm:$0xff]
    %v1239 = vld [vmem:[%s4 + $0x150] sm:$0xff]
    %v1240 = vld [vmem:[%s4 + $0x158] sm:$0xff]
    %v1241 = vld [vmem:[%s4 + $0x160] sm:$0xff]
    %v1242 = vld [vmem:[%s4 + $0x168] sm:$0xff]
    %v1243 = vld [vmem:[%s4 + $0x170] sm:$0xff]
    %v1244 = vld [vmem:[%s4 + $0x178] sm:$0xff]
    %v1245 = vld [vmem:[%s4 + $0x180] sm:$0xff]
    %v1246 = vld [vmem:[%s4 + $0x188] sm:$0xff]
    %v1247 = vld [vmem:[%s4 + $0x190] sm:$0xff]
    %v1248 = vld [vmem:[%s4 + $0x198] sm:$0xff]
    %v1249 = vld [vmem:[%s4 + $0x1a0] sm:$0xff]
    %v1250 = vld [vmem:[%s4 + $0x1a8] sm:$0xff]
    %v1251 = vld [vmem:[%s4 + $0x1b0] sm:$0xff]
    %v1252 = vld [vmem:[%s4 + $0x1b8] sm:$0xff]
    %v1253 = vld [vmem:[%s4 + $0x1c0] sm:$0xff]
    %v1254 = vld [vmem:[%s4 + $0x1c8] sm:$0xff]
    %v1255 = vld [vmem:[%s4 + $0x1d0] sm:$0xff]
    %v1256 = vld [vmem:[%s4 + $0x1d8] sm:$0xff]
    %v1257 = vld [vmem:[%s4 + $0x1e0] sm:$0xff]
    %v1258 = vld [vmem:[%s4 + $0x1e8] sm:$0xff]
    %v1259 = vld [vmem:[%s4 + $0x1f0] sm:$0xff]
    %v1260 = vld [vmem:[%s4 + $0x1f8] sm:$0xff]
    %1261 = vmatprep.subr.mxu0 %v1260
    %1262 = vmatpush1.msra.mxu0 %v1259
    %1263 = vmatprep.subr.mxu0 %v1258
    %1264 = vmatpush1.msra.mxu0 %v1257
    %1265 = vmatprep.subr.mxu0 %v1256
    %1266 = vmatpush1.msra.mxu0 %v1255
    %1267 = vmatprep.subr.mxu0 %v1254
    %1268 = vmatpush1.msra.mxu0 %v1253
    %1269 = vmatprep.subr.mxu0 %v1252
    %1270 = vmatpush1.msra.mxu0 %v1251
    %1271 = vmatprep.subr.mxu0 %v1250
    %1272 = vmatpush1.msra.mxu0 %v1249
    %1273 = vmatprep.subr.mxu0 %v1248
    %1274 = vmatpush1.msra.mxu0 %v1247
    %1275 = vmatprep.subr.mxu0 %v1246
    %1276 = vmatpush1.msra.mxu0 %v1245
    %1277 = vmatprep.subr.mxu0 %v1244
    %1278 = vmatpush1.msra.mxu0 %v1243
    %1279 = vmatprep.subr.mxu0 %v1242
    %1280 = vmatpush1.msra.mxu0 %v1241
    %1281 = vmatprep.subr.mxu0 %v1240
    %1282 = vmatpush1.msra.mxu0 %v1239
    %1283 = vmatprep.subr.mxu0 %v1238
    %1284 = vmatpush1.msra.mxu0 %v1237
    %1285 = vmatprep.subr.mxu0 %v1236
    %1286 = vmatpush1.msra.mxu0 %v1235
    %1287 = vmatprep.subr.mxu0 %v1234
    %1288 = vmatpush1.msra.mxu0 %v1233
    %1289 = vmatprep.subr.mxu0 %v1232
    %1290 = vmatpush1.msra.mxu0 %v1231
    %1291 = vmatprep.subr.mxu0 %v1230
    %1292 = vmatpush1.msra.mxu0 %v1229
    %1293 = vmatprep.subr.mxu0 0.0
    %1294 = vmatpush2.msra.mxu0 0.0
    %1295 = vmatprep.subr.mxu0 0.0
    %1296 = vmatpush2.msra.mxu0 0.0
    %1297 = vmatprep.subr.mxu0 0.0
    %1298 = vmatpush2.msra.mxu0 0.0
    %1299 = vmatprep.subr.mxu0 0.0
    %1300 = vmatpush2.msra.mxu0 0.0
    %1301 = vmatprep.subr.mxu0 0.0
    %1302 = vmatpush2.msra.mxu0 0.0
    %1303 = vmatprep.subr.mxu0 0.0
    %1304 = vmatpush2.msra.mxu0 0.0
    %1305 = vmatprep.subr.mxu0 0.0
    %1306 = vmatpush2.msra.mxu0 0.0
    %1307 = vmatprep.subr.mxu0 0.0
    %1308 = vmatpush2.msra.mxu0 0.0
    %1309 = vmatprep.subr.mxu0 0.0
    %1310 = vmatpush2.msra.mxu0 0.0
    %1311 = vmatprep.subr.mxu0 0.0
    %1312 = vmatpush2.msra.mxu0 0.0
    %1313 = vmatprep.subr.mxu0 0.0
    %1314 = vmatpush2.msra.mxu0 0.0
    %1315 = vmatprep.subr.mxu0 0.0
    %1316 = vmatpush2.msra.mxu0 0.0
    %1317 = vmatprep.subr.mxu0 0.0
    %1318 = vmatpush2.msra.mxu0 0.0
    %1319 = vmatprep.subr.mxu0 0.0
    %1320 = vmatpush2.msra.mxu0 0.0
    %1321 = vmatprep.subr.mxu0 0.0
    %1322 = vmatpush2.msra.mxu0 0.0
    %1323 = vmatprep.subr.mxu0 0.0
    %1324 = vmatpush2.msra.mxu0 0.0
    %1325 = vmatprep.mubr.f32.mxu0 0.0
    %1326 = vmatmul.mubr.f32.gmra.mxu0 %v1194
    %v1327 = vpop.f32.mrf.mxu0
    %v1328 = vadd.f32 0.0, %v1327
    %v1329 = vpop.f32.mrf.mxu0
    %v1330 = vadd.f32 0.0, %v1329
    %1331 = vdwg.mxu0
    %1332 = vmatprep.subr.mxu0 %v1228
    %1333 = vmatpush1.msra.mxu0 %v1227
    %1334 = vmatprep.subr.mxu0 %v1226
    %1335 = vmatpush1.msra.mxu0 %v1225
    %1336 = vmatprep.subr.mxu0 %v1224
    %1337 = vmatpush1.msra.mxu0 %v1223
    %1338 = vmatprep.subr.mxu0 %v1222
    %1339 = vmatpush1.msra.mxu0 %v1221
    %1340 = vmatprep.subr.mxu0 %v1220
    %1341 = vmatpush1.msra.mxu0 %v1219
    %1342 = vmatprep.subr.mxu0 %v1218
    %1343 = vmatpush1.msra.mxu0 %v1217
    %1344 = vmatprep.subr.mxu0 %v1216
    %1345 = vmatpush1.msra.mxu0 %v1215
    %1346 = vmatprep.subr.mxu0 %v1214
    %1347 = vmatpush1.msra.mxu0 %v1213
    %1348 = vmatprep.subr.mxu0 %v1212
    %1349 = vmatpush1.msra.mxu0 %v1211
    %1350 = vmatprep.subr.mxu0 %v1210
    %1351 = vmatpush1.msra.mxu0 %v1209
    %1352 = vmatprep.subr.mxu0 %v1208
    %1353 = vmatpush1.msra.mxu0 %v1207
    %1354 = vmatprep.subr.mxu0 %v1206
    %1355 = vmatpush1.msra.mxu0 %v1205
    %1356 = vmatprep.subr.mxu0 %v1204
    %1357 = vmatpush1.msra.mxu0 %v1203
    %1358 = vmatprep.subr.mxu0 %v1202
    %1359 = vmatpush1.msra.mxu0 %v1201
    %1360 = vmatprep.subr.mxu0 %v1200
    %1361 = vmatpush1.msra.mxu0 %v1199
    %1362 = vmatprep.subr.mxu0 %v1198
    %1363 = vmatpush1.msra.mxu0 %v1197
    %1364 = vmatprep.subr.mxu0 0.0
    %1365 = vmatpush2.msra.mxu0 0.0
    %1366 = vmatprep.subr.mxu0 0.0
    %1367 = vmatpush2.msra.mxu0 0.0
    %1368 = vmatprep.subr.mxu0 0.0
    %1369 = vmatpush2.msra.mxu0 0.0
    %1370 = vmatprep.subr.mxu0 0.0
    %1371 = vmatpush2.msra.mxu0 0.0
    %1372 = vmatprep.subr.mxu0 0.0
    %1373 = vmatpush2.msra.mxu0 0.0
    %1374 = vmatprep.subr.mxu0 0.0
    %1375 = vmatpush2.msra.mxu0 0.0
    %1376 = vmatprep.subr.mxu0 0.0
    %1377 = vmatpush2.msra.mxu0 0.0
    %1378 = vmatprep.subr.mxu0 0.0
    %1379 = vmatpush2.msra.mxu0 0.0
    %1380 = vmatprep.subr.mxu0 0.0
    %1381 = vmatpush2.msra.mxu0 0.0
    %1382 = vmatprep.subr.mxu0 0.0
    %1383 = vmatpush2.msra.mxu0 0.0
    %1384 = vmatprep.subr.mxu0 0.0
    %1385 = vmatpush2.msra.mxu0 0.0
    %1386 = vmatprep.subr.mxu0 0.0
    %1387 = vmatpush2.msra.mxu0 0.0
    %1388 = vmatprep.subr.mxu0 0.0
    %1389 = vmatpush2.msra.mxu0 0.0
    %1390 = vmatprep.subr.mxu0 0.0
    %1391 = vmatpush2.msra.mxu0 0.0
    %1392 = vmatprep.subr.mxu0 0.0
    %1393 = vmatpush2.msra.mxu0 0.0
    %1394 = vmatprep.subr.mxu0 0.0
    %1395 = vmatpush2.msra.mxu0 0.0
    %1396 = vmatprep.mubr.f32.mxu0 0.0
    %1397 = vmatmul.mubr.f32.gmra.mxu0 %v1193
    %v1398 = vpop.f32.mrf.mxu0
    %v1399 = vadd.f32 %v1328, %v1398
    %v1400 = vpop.f32.mrf.mxu0
    %v1401 = vadd.f32 %v1330, %v1400
    %1402 = vdwg.mxu0
    %v1403 = vld [vmem:[%s4 + $0x200] sm:$0xff]
    %v1404 = vld [vmem:[%s4 + $0x208] sm:$0xff]
    %v1405 = vld [vmem:[%s4 + $0x210] sm:$0xff]
    %v1406 = vld [vmem:[%s4 + $0x218] sm:$0xff]
    %v1407 = vld [vmem:[%s4 + $0x220] sm:$0xff]
    %v1408 = vld [vmem:[%s4 + $0x228] sm:$0xff]
    %v1409 = vld [vmem:[%s4 + $0x230] sm:$0xff]
    %v1410 = vld [vmem:[%s4 + $0x238] sm:$0xff]
    %v1411 = vld [vmem:[%s4 + $0x240] sm:$0xff]
    %v1412 = vld [vmem:[%s4 + $0x248] sm:$0xff]
    %v1413 = vld [vmem:[%s4 + $0x250] sm:$0xff]
    %v1414 = vld [vmem:[%s4 + $0x258] sm:$0xff]
    %v1415 = vld [vmem:[%s4 + $0x260] sm:$0xff]
    %v1416 = vld [vmem:[%s4 + $0x268] sm:$0xff]
    %v1417 = vld [vmem:[%s4 + $0x270] sm:$0xff]
    %v1418 = vld [vmem:[%s4 + $0x278] sm:$0xff]
    %v1419 = vld [vmem:[%s4 + $0x280] sm:$0xff]
    %v1420 = vld [vmem:[%s4 + $0x288] sm:$0xff]
    %v1421 = vld [vmem:[%s4 + $0x290] sm:$0xff]
    %v1422 = vld [vmem:[%s4 + $0x298] sm:$0xff]
    %v1423 = vld [vmem:[%s4 + $0x2a0] sm:$0xff]
    %v1424 = vld [vmem:[%s4 + $0x2a8] sm:$0xff]
    %v1425 = vld [vmem:[%s4 + $0x2b0] sm:$0xff]
    %v1426 = vld [vmem:[%s4 + $0x2b8] sm:$0xff]
    %v1427 = vld [vmem:[%s4 + $0x2c0] sm:$0xff]
    %v1428 = vld [vmem:[%s4 + $0x2c8] sm:$0xff]
    %v1429 = vld [vmem:[%s4 + $0x2d0] sm:$0xff]
    %v1430 = vld [vmem:[%s4 + $0x2d8] sm:$0xff]
    %v1431 = vld [vmem:[%s4 + $0x2e0] sm:$0xff]
    %v1432 = vld [vmem:[%s4 + $0x2e8] sm:$0xff]
    %v1433 = vld [vmem:[%s4 + $0x2f0] sm:$0xff]
    %v1434 = vld [vmem:[%s4 + $0x2f8] sm:$0xff]
    %1435 = vmatprep.subr.mxu0 %v1434
    %1436 = vmatpush1.msra.mxu0 %v1433
    %1437 = vmatprep.subr.mxu0 %v1432
    %1438 = vmatpush1.msra.mxu0 %v1431
    %1439 = vmatprep.subr.mxu0 %v1430
    %1440 = vmatpush1.msra.mxu0 %v1429
    %1441 = vmatprep.subr.mxu0 %v1428
    %1442 = vmatpush1.msra.mxu0 %v1427
    %1443 = vmatprep.subr.mxu0 %v1426
    %1444 = vmatpush1.msra.mxu0 %v1425
    %1445 = vmatprep.subr.mxu0 %v1424
    %1446 = vmatpush1.msra.mxu0 %v1423
    %1447 = vmatprep.subr.mxu0 %v1422
    %1448 = vmatpush1.msra.mxu0 %v1421
    %1449 = vmatprep.subr.mxu0 %v1420
    %1450 = vmatpush1.msra.mxu0 %v1419
    %1451 = vmatprep.subr.mxu0 %v1418
    %1452 = vmatpush1.msra.mxu0 %v1417
    %1453 = vmatprep.subr.mxu0 %v1416
    %1454 = vmatpush1.msra.mxu0 %v1415
    %1455 = vmatprep.subr.mxu0 %v1414
    %1456 = vmatpush1.msra.mxu0 %v1413
    %1457 = vmatprep.subr.mxu0 %v1412
    %1458 = vmatpush1.msra.mxu0 %v1411
    %1459 = vmatprep.subr.mxu0 %v1410
    %1460 = vmatpush1.msra.mxu0 %v1409
    %1461 = vmatprep.subr.mxu0 %v1408
    %1462 = vmatpush1.msra.mxu0 %v1407
    %1463 = vmatprep.subr.mxu0 %v1406
    %1464 = vmatpush1.msra.mxu0 %v1405
    %1465 = vmatprep.subr.mxu0 %v1404
    %1466 = vmatpush1.msra.mxu0 %v1403
    %1467 = vmatprep.subr.mxu0 0.0
    %1468 = vmatpush2.msra.mxu0 0.0
    %1469 = vmatprep.subr.mxu0 0.0
    %1470 = vmatpush2.msra.mxu0 0.0
    %1471 = vmatprep.subr.mxu0 0.0
    %1472 = vmatpush2.msra.mxu0 0.0
    %1473 = vmatprep.subr.mxu0 0.0
    %1474 = vmatpush2.msra.mxu0 0.0
    %1475 = vmatprep.subr.mxu0 0.0
    %1476 = vmatpush2.msra.mxu0 0.0
    %1477 = vmatprep.subr.mxu0 0.0
    %1478 = vmatpush2.msra.mxu0 0.0
    %1479 = vmatprep.subr.mxu0 0.0
    %1480 = vmatpush2.msra.mxu0 0.0
    %1481 = vmatprep.subr.mxu0 0.0
    %1482 = vmatpush2.msra.mxu0 0.0
    %1483 = vmatprep.subr.mxu0 0.0
    %1484 = vmatpush2.msra.mxu0 0.0
    %1485 = vmatprep.subr.mxu0 0.0
    %1486 = vmatpush2.msra.mxu0 0.0
    %1487 = vmatprep.subr.mxu0 0.0
    %1488 = vmatpush2.msra.mxu0 0.0
    %1489 = vmatprep.subr.mxu0 0.0
    %1490 = vmatpush2.msra.mxu0 0.0
    %1491 = vmatprep.subr.mxu0 0.0
    %1492 = vmatpush2.msra.mxu0 0.0
    %1493 = vmatprep.subr.mxu0 0.0
    %1494 = vmatpush2.msra.mxu0 0.0
    %1495 = vmatprep.subr.mxu0 0.0
    %1496 = vmatpush2.msra.mxu0 0.0
    %1497 = vmatprep.subr.mxu0 0.0
    %1498 = vmatpush2.msra.mxu0 0.0
    %1499 = vmatprep.mubr.f32.mxu0 0.0
    %1500 = vmatmul.mubr.f32.gmra.mxu0 %v1195
    %v1501 = vpop.f32.mrf.mxu0
    %v1502 = vadd.f32 0.0, %v1501
    %v1503 = vpop.f32.mrf.mxu0
    %v1504 = vadd.f32 0.0, %v1503
    %1505 = vdwg.mxu0
    %v1506 = vadd.f32 %v1399, %v1502
    %v1507 = vadd.f32 %v1401, %v1504
    %v1508 = vld [vmem:[%s4 + $0x300] sm:$0xff]
    %v1509 = vld [vmem:[%s4 + $0x308] sm:$0xff]
    %v1510 = vld [vmem:[%s4 + $0x310] sm:$0xff]
    %v1511 = vld [vmem:[%s4 + $0x318] sm:$0xff]
    %v1512 = vld [vmem:[%s4 + $0x320] sm:$0xff]
    %v1513 = vld [vmem:[%s4 + $0x328] sm:$0xff]
    %v1514 = vld [vmem:[%s4 + $0x330] sm:$0xff]
    %v1515 = vld [vmem:[%s4 + $0x338] sm:$0xff]
    %v1516 = vld [vmem:[%s4 + $0x340] sm:$0xff]
    %v1517 = vld [vmem:[%s4 + $0x348] sm:$0xff]
    %v1518 = vld [vmem:[%s4 + $0x350] sm:$0xff]
    %v1519 = vld [vmem:[%s4 + $0x358] sm:$0xff]
    %v1520 = vld [vmem:[%s4 + $0x360] sm:$0xff]
    %v1521 = vld [vmem:[%s4 + $0x368] sm:$0xff]
    %v1522 = vld [vmem:[%s4 + $0x370] sm:$0xff]
    %v1523 = vld [vmem:[%s4 + $0x378] sm:$0xff]
    %v1524 = vld [vmem:[%s4 + $0x380] sm:$0xff]
    %v1525 = vld [vmem:[%s4 + $0x388] sm:$0xff]
    %v1526 = vld [vmem:[%s4 + $0x390] sm:$0xff]
    %v1527 = vld [vmem:[%s4 + $0x398] sm:$0xff]
    %v1528 = vld [vmem:[%s4 + $0x3a0] sm:$0xff]
    %v1529 = vld [vmem:[%s4 + $0x3a8] sm:$0xff]
    %v1530 = vld [vmem:[%s4 + $0x3b0] sm:$0xff]
    %v1531 = vld [vmem:[%s4 + $0x3b8] sm:$0xff]
    %v1532 = vld [vmem:[%s4 + $0x3c0] sm:$0xff]
    %v1533 = vld [vmem:[%s4 + $0x3c8] sm:$0xff]
    %v1534 = vld [vmem:[%s4 + $0x3d0] sm:$0xff]
    %v1535 = vld [vmem:[%s4 + $0x3d8] sm:$0xff]
    %v1536 = vld [vmem:[%s4 + $0x3e0] sm:$0xff]
    %v1537 = vld [vmem:[%s4 + $0x3e8] sm:$0xff]
    %v1538 = vld [vmem:[%s4 + $0x3f0] sm:$0xff]
    %v1539 = vld [vmem:[%s4 + $0x3f8] sm:$0xff]
    %1540 = vmatprep.subr.mxu0 %v1539
    %1541 = vmatpush1.msra.mxu0 %v1538
    %1542 = vmatprep.subr.mxu0 %v1537
    %1543 = vmatpush1.msra.mxu0 %v1536
    %1544 = vmatprep.subr.mxu0 %v1535
    %1545 = vmatpush1.msra.mxu0 %v1534
    %1546 = vmatprep.subr.mxu0 %v1533
    %1547 = vmatpush1.msra.mxu0 %v1532
    %1548 = vmatprep.subr.mxu0 %v1531
    %1549 = vmatpush1.msra.mxu0 %v1530
    %1550 = vmatprep.subr.mxu0 %v1529
    %1551 = vmatpush1.msra.mxu0 %v1528
    %1552 = vmatprep.subr.mxu0 %v1527
    %1553 = vmatpush1.msra.mxu0 %v1526
    %1554 = vmatprep.subr.mxu0 %v1525
    %1555 = vmatpush1.msra.mxu0 %v1524
    %1556 = vmatprep.subr.mxu0 %v1523
    %1557 = vmatpush1.msra.mxu0 %v1522
    %1558 = vmatprep.subr.mxu0 %v1521
    %1559 = vmatpush1.msra.mxu0 %v1520
    %1560 = vmatprep.subr.mxu0 %v1519
    %1561 = vmatpush1.msra.mxu0 %v1518
    %1562 = vmatprep.subr.mxu0 %v1517
    %1563 = vmatpush1.msra.mxu0 %v1516
    %1564 = vmatprep.subr.mxu0 %v1515
    %1565 = vmatpush1.msra.mxu0 %v1514
    %1566 = vmatprep.subr.mxu0 %v1513
    %1567 = vmatpush1.msra.mxu0 %v1512
    %1568 = vmatprep.subr.mxu0 %v1511
    %1569 = vmatpush1.msra.mxu0 %v1510
    %1570 = vmatprep.subr.mxu0 %v1509
    %1571 = vmatpush1.msra.mxu0 %v1508
    %1572 = vmatprep.subr.mxu0 0.0
    %1573 = vmatpush2.msra.mxu0 0.0
    %1574 = vmatprep.subr.mxu0 0.0
    %1575 = vmatpush2.msra.mxu0 0.0
    %1576 = vmatprep.subr.mxu0 0.0
    %1577 = vmatpush2.msra.mxu0 0.0
    %1578 = vmatprep.subr.mxu0 0.0
    %1579 = vmatpush2.msra.mxu0 0.0
    %1580 = vmatprep.subr.mxu0 0.0
    %1581 = vmatpush2.msra.mxu0 0.0
    %1582 = vmatprep.subr.mxu0 0.0
    %1583 = vmatpush2.msra.mxu0 0.0
    %1584 = vmatprep.subr.mxu0 0.0
    %1585 = vmatpush2.msra.mxu0 0.0
    %1586 = vmatprep.subr.mxu0 0.0
    %1587 = vmatpush2.msra.mxu0 0.0
    %1588 = vmatprep.subr.mxu0 0.0
    %1589 = vmatpush2.msra.mxu0 0.0
    %1590 = vmatprep.subr.mxu0 0.0
    %1591 = vmatpush2.msra.mxu0 0.0
    %1592 = vmatprep.subr.mxu0 0.0
    %1593 = vmatpush2.msra.mxu0 0.0
    %1594 = vmatprep.subr.mxu0 0.0
    %1595 = vmatpush2.msra.mxu0 0.0
    %1596 = vmatprep.subr.mxu0 0.0
    %1597 = vmatpush2.msra.mxu0 0.0
    %1598 = vmatprep.subr.mxu0 0.0
    %1599 = vmatpush2.msra.mxu0 0.0
    %1600 = vmatprep.subr.mxu0 0.0
    %1601 = vmatpush2.msra.mxu0 0.0
    %1602 = vmatprep.subr.mxu0 0.0
    %1603 = vmatpush2.msra.mxu0 0.0
    %1604 = vmatprep.mubr.f32.mxu0 0.0
    %1605 = vmatmul.mubr.f32.gmra.mxu0 %v1196
    %v1606 = vpop.f32.mrf.mxu0
    %v1607 = vadd.f32 0.0, %v1606
    %v1608 = vpop.f32.mrf.mxu0
    %v1609 = vadd.f32 0.0, %v1608
    %1610 = vdwg.mxu0
    %v1611 = vadd.f32 %v1506, %v1607
    %v1612 = vadd.f32 %v1507, %v1609
    %s1613 = scalar_lea.vmem %s4, 1344
    %v1614 = vld [vmem:[%s1613] ss:$8 sm:$0x3]
    %v1616 = vlaneseq
    %v1617 = vshrl.u32 %v1616, 7
    %v1618 = vsub.s32 0, %v1617
    %v1619 = vrot.slane %v1614, %v1618
    %v1620 = vlaneseq
    %v1621 = vshrl.u32 %v1620, 7
    %v1622 = vsub.s32 1, %v1621
    %v1623 = vrot.slane %v1614, %v1622
    %v1626 = vadd.f32 %v1611, %v1619
    %v1627 = vadd.f32 %v1612, %v1623
    %v1628 = vmax.f32 %v1626, 0.0
    %v1629 = vmax.f32 %v1627, 0.0
    %v1630 = vld [vmem:[%s4 + $0x400] sm:$0xff]
    %v1631 = vld [vmem:[%s4 + $0x410] sm:$0xff]
    %v1632 = vld [vmem:[%s4 + $0x420] sm:$0xff]
    %v1633 = vld [vmem:[%s4 + $0x430] sm:$0xff]
    %v1634 = vld [vmem:[%s4 + $0x440] sm:$0xff]
    %v1635 = vld [vmem:[%s4 + $0x450] sm:$0xff]
    %v1636 = vld [vmem:[%s4 + $0x460] sm:$0xff]
    %v1637 = vld [vmem:[%s4 + $0x470] sm:$0xff]
    %v1638 = vld [vmem:[%s4 + $0x480] sm:$0xff]
    %v1639 = vld [vmem:[%s4 + $0x490] sm:$0xff]
    %v1640 = vld [vmem:[%s4 + $0x4a0] sm:$0xff]
    %v1641 = vld [vmem:[%s4 + $0x4b0] sm:$0xff]
    %v1642 = vld [vmem:[%s4 + $0x4c0] sm:$0xff]
    %v1643 = vld [vmem:[%s4 + $0x4d0] sm:$0xff]
    %v1644 = vld [vmem:[%s4 + $0x4e0] sm:$0xff]
    %v1645 = vld [vmem:[%s4 + $0x4f0] sm:$0xff]
    %v1646 = vld [vmem:[%s4 + $0x500] sm:$0xff]
    %v1647 = vld [vmem:[%s4 + $0x510] sm:$0xff]
    %v1648 = vld [vmem:[%s4 + $0x520] sm:$0xff]
    %v1649 = vld [vmem:[%s4 + $0x530] sm:$0xff]
    %v1650 = vld [vmem:[%s4 + $0x541] ss:$0 sm:$0xff]
    %vm1651 = vcmask 261120
    %v1653 = vsel %vm1651, %v1629, 0
    %1655 = vmatprep.subr.mxu0 0.0
    %1656 = vmatpush1.msra.mxu0 %v1645
    %1657 = vmatprep.subr.mxu0 0.0
    %1658 = vmatpush1.msra.mxu0 %v1644
    %1659 = vmatprep.subr.mxu0 0.0
    %1660 = vmatpush1.msra.mxu0 %v1643
    %1661 = vmatprep.subr.mxu0 0.0
    %1662 = vmatpush1.msra.mxu0 %v1642
    %1663 = vmatprep.subr.mxu0 0.0
    %1664 = vmatpush1.msra.mxu0 %v1641
    %1665 = vmatprep.subr.mxu0 0.0
    %1666 = vmatpush1.msra.mxu0 %v1640
    %1667 = vmatprep.subr.mxu0 0.0
    %1668 = vmatpush1.msra.mxu0 %v1639
    %1669 = vmatprep.subr.mxu0 0.0
    %1670 = vmatpush1.msra.mxu0 %v1638
    %1671 = vmatprep.subr.mxu0 0.0
    %1672 = vmatpush1.msra.mxu0 %v1637
    %1673 = vmatprep.subr.mxu0 0.0
    %1674 = vmatpush1.msra.mxu0 %v1636
    %1675 = vmatprep.subr.mxu0 0.0
    %1676 = vmatpush1.msra.mxu0 %v1635
    %1677 = vmatprep.subr.mxu0 0.0
    %1678 = vmatpush1.msra.mxu0 %v1634
    %1679 = vmatprep.subr.mxu0 0.0
    %1680 = vmatpush1.msra.mxu0 %v1633
    %1681 = vmatprep.subr.mxu0 0.0
    %1682 = vmatpush1.msra.mxu0 %v1632
    %1683 = vmatprep.subr.mxu0 0.0
    %1684 = vmatpush1.msra.mxu0 %v1631
    %1685 = vmatprep.subr.mxu0 0.0
    %1686 = vmatpush1.msra.mxu0 %v1630
    %1687 = vmatprep.subr.mxu0 0.0
    %1688 = vmatpush2.msra.mxu0 0.0
    %1689 = vmatprep.subr.mxu0 0.0
    %1690 = vmatpush2.msra.mxu0 0.0
    %1691 = vmatprep.subr.mxu0 0.0
    %1692 = vmatpush2.msra.mxu0 0.0
    %1693 = vmatprep.subr.mxu0 0.0
    %1694 = vmatpush2.msra.mxu0 0.0
    %1695 = vmatprep.subr.mxu0 0.0
    %1696 = vmatpush2.msra.mxu0 0.0
    %1697 = vmatprep.subr.mxu0 0.0
    %1698 = vmatpush2.msra.mxu0 0.0
    %1699 = vmatprep.subr.mxu0 0.0
    %1700 = vmatpush2.msra.mxu0 0.0
    %1701 = vmatprep.subr.mxu0 0.0
    %1702 = vmatpush2.msra.mxu0 0.0
    %1703 = vmatprep.subr.mxu0 0.0
    %1704 = vmatpush2.msra.mxu0 0.0
    %1705 = vmatprep.subr.mxu0 0.0
    %1706 = vmatpush2.msra.mxu0 0.0
    %1707 = vmatprep.subr.mxu0 0.0
    %1708 = vmatpush2.msra.mxu0 0.0
    %1709 = vmatprep.subr.mxu0 0.0
    %1710 = vmatpush2.msra.mxu0 0.0
    %1711 = vmatprep.subr.mxu0 0.0
    %1712 = vmatpush2.msra.mxu0 %v1649
    %1713 = vmatprep.subr.mxu0 0.0
    %1714 = vmatpush2.msra.mxu0 %v1648
    %1715 = vmatprep.subr.mxu0 0.0
    %1716 = vmatpush2.msra.mxu0 %v1647
    %1717 = vmatprep.subr.mxu0 0.0
    %1718 = vmatpush2.msra.mxu0 %v1646
    %1719 = vmatprep.mubr.f32.mxu0 %v1653
    %1720 = vmatmul.mubr.f32.gmra.mxu0 %v1628
    %v1721 = vpop.f32.mrf.mxu0
    %v1722 = vadd.f32 %v1650, %v1721
    %v1723 = vpop.f32.mrf.mxu0
    %1724 = vdwg.mxu0
    %vm1725 = vcmask 74752
    %1726 = vst.msk [vmem:[#allocation2] sm:$0x3] %vm1725, %v1722
    // Predicated region
    $region22: #{model_forward_pallas.1} parent=1 // pred_check
      _
    $region23: #{model_forward_pallas.1} parent=1 // pred_check_branch
      %1728 = sbr.rel (0) target = $region25
    $region24: #{model_forward_pallas.1} parent=1 // pred_region
      %s1730 = ssub.s32 32, 32
      %1731 = vsyncadd [#allocation3], %s1730
      %s1733 = sshll.u32 [#allocation2], 4
      %s1734 = int_to_ptr.vmem [resolvable:$true] %s1733
      %1736 = dma.vmem_to_hbm [thread:$0]  %s1734, 32, %s5, [#allocation3]
    $region25: #{model_forward_pallas.1} parent=1 // pred_fallthru
      _
    // Predicated region
    $region26: #{model_forward_pallas.1} parent=1 // pred_check
      _
    $region27: #{model_forward_pallas.1} parent=1 // pred_check_branch
      %1738 = sbr.rel (0) target = $region29
    $region28: #{model_forward_pallas.1} parent=1 // pred_region
      %1739 = dma.done [#allocation3], 32
    $region29: #{model_forward_pallas.1} parent=1 // pred_fallthru
      _
    %1740 = vsyncpa [#allocation3], 1

</llo_original>
